<compile_context>
chip_gen: v6e
topology: v6e:2x2x1
jax: 0.10.0
libtpu: 0.0.40
codegen_flags: <defaults>
</compile_context>

<pallas_src>
import functools

import numpy as np
import jax
import jax.numpy as jnp
from jax.experimental import pallas as pl
from jax.experimental.pallas import tpu as pltpu


def _ceil_to(x, m):
    return ((x + m - 1) // m) * m


# ----------------------------- fused Pallas kernel --------------------------


def _decoder_wav_kernel(*refs, n_layers, tile, halo, text, seq_len, num_tiles,
                        negative_slope, mxu_dtype):
    """One (batch row, time tile) step of the Decoder_Wav forward.

    refs layout:
      refs[0]                        y_ref    (1, 1, T_pad)  padded audio row (VMEM resident)
      refs[1+2*li], refs[2+2*li]     w, b for layer li
          layer 0       : w (C1, 3)          b (C1, 1)    (VPU broadcast path)
          1..L-2        : w (Cout, 3*Cin)    b (Cout, 1)  (im2col MXU path, pre-cast)
          L-1 (folded)  : w (msg, 3*C)       b (msg, 1)
      refs[-3]                       o_ref    (1, msg, 1)
      refs[-2], refs[-1]             sum_ref (C, 1), edge0_ref (C, 1)   f32 scratch
    """
    y_ref = refs[0]
    param_refs = refs[1:1 + 2 * n_layers]
    o_ref = refs[1 + 2 * n_layers]
    sum_ref = refs[2 + 2 * n_layers]
    edge0_ref = refs[3 + 2 * n_layers]

    kt = pl.program_id(1)
    t_start = kt * tile                       # tile is a multiple of 128 -> lane-aligned slice

    @pl.when(kt == 0)
    def _init():
        sum_ref[...] = jnp.zeros_like(sum_ref)

    # Overlapping window of the VMEM-resident padded row: local j <-> global t = t_start - halo + j.
    x = y_ref[0, :, pl.ds(pl.multiple_of(t_start, 128), text)].astype(jnp.float32)   # (1, text)

    lane = jax.lax.broadcasted_iota(jnp.int32, (1, text), 1)
    g = lane + (t_start - halo)                               # global time index per lane
    tmask = jnp.logical_and(g >= 0, g < seq_len)              # inside the true sequence

    # ---- layer 0 (Cin == 1): VPU broadcast path (a K=1 matmul would waste the MXU) ----
    w0 = param_refs[0][...].astype(jnp.float32)               # (C1, 3)
    b0 = param_refs[1][...].astype(jnp.float32)               # (C1, 1)
    x_prev = pltpu.roll(x, 1, 1)                              # x(t-1); tile-edge wrap lands in halo
    x_next = pltpu.roll(x, text - 1, 1)                       # x(t+1)
    h = w0[:, 0:1] * x_prev + w0[:, 1:2] * x + w0[:, 2:3] * x_next + b0   # (C1, text)
    h = jnp.where(h >= 0, h, negative_slope * h)              # LeakyReLU
    h = jnp.where(tmask, h, 0.0)                              # Conv1d zero padding at true ends

    # ---- layers 1 .. L-2: im2col (Cout, 3*Cin) @ (3*Cin, text) on the MXU ----
    for li in range(1, n_layers - 1):
        w = param_refs[2 * li][...]                           # (Cout, 3*Cin), pre-cast host-side
        b = param_refs[2 * li + 1][...].astype(jnp.float32)   # (Cout, 1)
        hm = h.astype(mxu_dtype)
        cols = jnp.concatenate(
            [pltpu.roll(hm, 1, 1), hm, pltpu.roll(hm, text - 1, 1)], axis=0)   # (3*Cin, text)
        acc = jnp.dot(w, cols, preferred_element_type=jnp.float32) + b
        acc = jnp.where(acc >= 0, acc, negative_slope * acc)
        h = jnp.where(tmask, acc, 0.0)

    # ---- accumulate the time-sum of the penultimate activations over this tile's valid region ----
    vmask = jnp.logical_and(lane >= halo, lane < halo + tile)
    sum_ref[...] += jnp.sum(jnp.where(vmask, h, 0.0), axis=1, keepdims=True)   # (C, 1)

    @pl.when(kt == 0)
    def _edge0():
        edge0_ref[...] = h[:, halo:halo + 1]                  # h_{L-1}(t = 0)

    # ---- last tile: fold the final (no-activation) conv into the mean, write output once ----
    @pl.when(kt == num_tiles - 1)
    def _finalize():
        w_last = param_refs[2 * (n_layers - 1)][...].astype(jnp.float32)        # (msg, 3*C)
        b_last = param_refs[2 * (n_layers - 1) + 1][...].astype(jnp.float32)    # (msg, 1)
        j_last = (seq_len - 1) - (num_tiles - 1) * tile + halo                  # static local index
        s = sum_ref[...]
        e0 = edge0_ref[...]
        eT = h[:, j_last:j_last + 1]                          # h_{L-1}(t = T-1)
        # mean_t [h(t-1); h(t); h(t+1)] with zero boundaries (exact algebraic identity).
        cols_mean = jnp.concatenate([s - eT, s, s - e0], axis=0) * (1.0 / seq_len)   # (3*C, 1)
        msg = jnp.dot(w_last, cols_mean, preferred_element_type=jnp.float32) + b_last
        o_ref[0] = msg.astype(o_ref.dtype)                    # (msg, 1)


# ----------------------------- wrapper ---------------------------------------


def decoder_wav_forward(y, params, *, tile_t=8192, mxu_dtype=jnp.float32):
    """Decoder_Wav.forward.

    y: (B, T) audio.  params: list of (w (3, Cin, Cout), b (1, Cout)) Conv1d layers.
    Returns msg (B, 1, msg_length), matching the PyTorch module.

    mxu_dtype=jnp.bfloat16 halves matmul-operand traffic and runs the MXU at its native bf16 rate
    on v5e/v6e/v7x (f32 accumulation and f32 elementwise math are kept); default f32 for parity.
    tile_t is the time tile (rounded to a multiple of 128); ~8k-16k on v7x (64 MiB VMEM),
    2-4x larger is fine on v5e/v6e.
    """
    B, T = y.shape
    n_layers = len(params)
    assert n_layers >= 2
    msg_length = params[-1][0].shape[-1]
    c_pen = params[-1][0].shape[1]                  # channels of the penultimate activation

    halo = n_layers - 1                             # conv layers executed in-kernel (last is folded)
    tile = _ceil_to(min(tile_t, _ceil_to(T, 128)), 128)
    num_tiles = (T + tile - 1) // tile
    text = _ceil_to(tile + 2 * halo, 128)           # lane-aligned overlap-save window
    t_pad = (num_tiles - 1) * tile + text           # padded length (multiple of 128)

    # True samples live at padded index [halo, halo + T); everything else is zero.
    # TODO(synk): for extremely long audio the resident input row itself could be streamed too.
    y_pad = jnp.pad(y, ((0, 0), (halo, t_pad - T - halo))).reshape(B, 1, t_pad)

    flat_args = [y_pad]
    in_specs = [pl.BlockSpec((1, 1, t_pad), lambda b, kt: (b, 0, 0))]
    for li, (w, b) in enumerate(params):
        k, cin, cout = w.shape
        assert k == 3
        if li == 0:
            assert cin == 1
            w_mat = jnp.transpose(w[:, 0, :], (1, 0))                     # (C1, 3)   VPU path
            w_dt = jnp.float32
        else:
            w_mat = jnp.transpose(w, (2, 0, 1)).reshape(cout, k * cin)    # (Cout, 3*Cin)
            w_dt = jnp.float32 if li == n_layers - 1 else mxu_dtype       # pre-cast host-side
        flat_args.append(w_mat.astype(w_dt))
        in_specs.append(pl.BlockSpec(tuple(w_mat.shape), lambda b, kt: (0, 0)))
        flat_args.append(jnp.reshape(b, (cout, 1)).astype(jnp.float32))
        in_specs.append(pl.BlockSpec((cout, 1), lambda b, kt: (0, 0)))

    kernel = functools.partial(
        _decoder_wav_kernel, n_layers=n_layers, tile=tile, halo=halo, text=text,
        seq_len=T, num_tiles=num_tiles, negative_slope=0.01, mxu_dtype=mxu_dtype)

    out = pl.pallas_call(
        kernel,
        out_shape=jax.ShapeDtypeStruct((B, msg_length, 1), y.dtype),
        grid=(B, num_tiles),
        in_specs=in_specs,
        out_specs=pl.BlockSpec((1, msg_length, 1), lambda b, kt: (b, 0, 0)),
        scratch_shapes=[pltpu.VMEM((c_pen, 1), jnp.float32),    # running time-sum
                        pltpu.VMEM((c_pen, 1), jnp.float32)],   # h(t=0) edge column
        compiler_params=pltpu.CompilerParams(
            dimension_semantics=("parallel", "arbitrary"),
            vmem_limit_bytes=48 * 1024 * 1024),
    )(*flat_args)
    # TODO(synk): for B==1 on v7x, additionally shard the T-tile axis across the two TensorCores.
    return jnp.transpose(out, (0, 2, 1))            # (B, 1, msg_length)


# ----------------------------- model setup & reference -----------------------


def init_extracter_params(key, latent_dim, msg_length, n_layers):
    """Conv1d stack: 1 -> latent_dim -> ... -> latent_dim -> msg_length (all k=3, pad=1)."""
    channels = [1] + [latent_dim] * (n_layers - 1) + [msg_length]
    params = []
    for li in range(n_layers):
        cin, cout = channels[li], channels[li + 1]
        key, kw, kb = jax.random.split(key, 3)
        scale = 1.0 / jnp.sqrt(jnp.float32(cin * 3))
        w = jax.random.normal(kw, (3, cin, cout), jnp.float32) * scale
        b = jax.random.normal(kb, (1, cout), jnp.float32) * 0.01
        params.append((w, b))
    return params


def _reference_forward(y, params, negative_slope=0.01):
    """Pure-JAX reference with PyTorch Conv1d (cross-correlation, pad=1) semantics."""
    x = y[:, None, :]
    n_layers = len(params)
    for li, (w, b) in enumerate(params):
        wt = jnp.transpose(w, (2, 1, 0))            # (Cout, Cin, 3) == OIW
        x = jax.lax.conv_general_dilated(
            x, wt, window_strides=(1,), padding=((1, 1),),
            dimension_numbers=("NCW", "OIW", "NCW"),
            precision=jax.lax.Precision.HIGHEST)
        x = x + jnp.reshape(b, (1, -1, 1))
        if li < n_layers - 1:
            x = jnp.where(x >= 0, x, negative_slope * x)
    return jnp.transpose(jnp.mean(x, axis=2, keepdims=True), (0, 2, 1))


if __name__ == "__main__":
    # small config consistent with the module:
    # model_config['conv2']['LSTM_dim'] = 32, msg_length = 8, nlayers_decoder = 6 -> 8 conv layers
    B, T = 2, 300
    latent_dim = 32
    msg_length = 8
    nlayers_decoder = 6
    n_layers = nlayers_decoder + 2

    key = jax.random.PRNGKey(0)
    key, ky = jax.random.split(key)
    y = jax.random.normal(ky, (B, T), jnp.float32)
    params = init_extracter_params(key, latent_dim, msg_length, n_layers)

    # tile_t=128 exercises multiple time tiles + a ragged last tile at this small T.
    fwd = jax.jit(functools.partial(decoder_wav_forward, tile_t=128))
    msg = jax.block_until_ready(fwd(y, params))

    assert msg.shape == (B, 1, msg_length), msg.shape
    assert msg.dtype == jnp.float32

    ref = jax.block_until_ready(_reference_forward(y, params))
    np.testing.assert_allclose(np.asarray(msg), np.asarray(ref), rtol=5e-3, atol=5e-4)
    print("KERNEL_OK")
</pallas_src>

<mosaic_0001>
module attributes {stable_mosaic.version = 11 : i64} {
  func.func @_decoder_wav_kernel(%arg0: i32, %arg1: i32, %arg2: memref<1x1x512xf32, #tpu.memory_space<vmem>>, %arg3: memref<32x3xf32, #tpu.memory_space<vmem>>, %arg4: memref<32x1xf32, #tpu.memory_space<vmem>>, %arg5: memref<32x96xf32, #tpu.memory_space<vmem>>, %arg6: memref<32x1xf32, #tpu.memory_space<vmem>>, %arg7: memref<32x96xf32, #tpu.memory_space<vmem>>, %arg8: memref<32x1xf32, #tpu.memory_space<vmem>>, %arg9: memref<32x96xf32, #tpu.memory_space<vmem>>, %arg10: memref<32x1xf32, #tpu.memory_space<vmem>>, %arg11: memref<32x96xf32, #tpu.memory_space<vmem>>, %arg12: memref<32x1xf32, #tpu.memory_space<vmem>>, %arg13: memref<32x96xf32, #tpu.memory_space<vmem>>, %arg14: memref<32x1xf32, #tpu.memory_space<vmem>>, %arg15: memref<32x96xf32, #tpu.memory_space<vmem>>, %arg16: memref<32x1xf32, #tpu.memory_space<vmem>>, %arg17: memref<8x96xf32, #tpu.memory_space<vmem>>, %arg18: memref<8x1xf32, #tpu.memory_space<vmem>>, %arg19: memref<1x8x1xf32, #tpu.memory_space<vmem>>, %arg20: memref<32x1xf32, #tpu.memory_space<vmem>>, %arg21: memref<32x1xf32, #tpu.memory_space<vmem>>) attributes {dimension_semantics = [#tpu.dimension_semantics<parallel>, #tpu.dimension_semantics<arbitrary>], iteration_bounds = array<i64: 2, 3>, scalar_prefetch = 0 : i64, scratch_operands = 2 : i64, tpu.core_type = #tpu.core_type<tc>, window_params = [{transform_indices = @transform_0, window_bounds = array<i64: 1, 1, 512>}, {pipeline_mode = #tpu.pipeline_mode<synchronous>, transform_indices = @transform_1, window_bounds = array<i64: 32, 3>}, {pipeline_mode = #tpu.pipeline_mode<synchronous>, transform_indices = @transform_2, window_bounds = array<i64: 32, 1>}, {pipeline_mode = #tpu.pipeline_mode<synchronous>, transform_indices = @transform_3, window_bounds = array<i64: 32, 96>}, {pipeline_mode = #tpu.pipeline_mode<synchronous>, transform_indices = @transform_4, window_bounds = array<i64: 32, 1>}, {pipeline_mode = #tpu.pipeline_mode<synchronous>, transform_indices = @transform_5, window_bounds = array<i64: 32, 96>}, {pipeline_mode = #tpu.pipeline_mode<synchronous>, transform_indices = @transform_6, window_bounds = array<i64: 32, 1>}, {pipeline_mode = #tpu.pipeline_mode<synchronous>, transform_indices = @transform_7, window_bounds = array<i64: 32, 96>}, {pipeline_mode = #tpu.pipeline_mode<synchronous>, transform_indices = @transform_8, window_bounds = array<i64: 32, 1>}, {pipeline_mode = #tpu.pipeline_mode<synchronous>, transform_indices = @transform_9, window_bounds = array<i64: 32, 96>}, {pipeline_mode = #tpu.pipeline_mode<synchronous>, transform_indices = @transform_10, window_bounds = array<i64: 32, 1>}, {pipeline_mode = #tpu.pipeline_mode<synchronous>, transform_indices = @transform_11, window_bounds = array<i64: 32, 96>}, {pipeline_mode = #tpu.pipeline_mode<synchronous>, transform_indices = @transform_12, window_bounds = array<i64: 32, 1>}, {pipeline_mode = #tpu.pipeline_mode<synchronous>, transform_indices = @transform_13, window_bounds = array<i64: 32, 96>}, {pipeline_mode = #tpu.pipeline_mode<synchronous>, transform_indices = @transform_14, window_bounds = array<i64: 32, 1>}, {pipeline_mode = #tpu.pipeline_mode<synchronous>, transform_indices = @transform_15, window_bounds = array<i64: 8, 96>}, {pipeline_mode = #tpu.pipeline_mode<synchronous>, transform_indices = @transform_16, window_bounds = array<i64: 8, 1>}, {transform_indices = @transform_17, window_bounds = array<i64: 1, 8, 1>}]} {
    %c128_i32 = arith.constant 128 : i32
    %0 = arith.muli %arg1, %c128_i32 : i32
    %c0_i32 = arith.constant 0 : i32
    %1 = arith.cmpi eq, %arg1, %c0_i32 : i32
    %2 = arith.extui %1 : i1 to i32
    %c0_i32_0 = arith.constant 0 : i32
    %3 = arith.cmpi ne, %2, %c0_i32_0 : i32
    scf.if %3 {
      %cst_79 = arith.constant 0.000000e+00 : f32
      %168 = vector.broadcast %cst_79 : f32 to vector<32x1xf32>
      %c0_80 = arith.constant 0 : index
      %c0_81 = arith.constant 0 : index
      %169 = vector.load %arg20[%c0_80, %c0_81] : memref<32x1xf32, #tpu.memory_space<vmem>>, vector<32x1xf32>
      tpu.vector_store %arg20[%c0_80, %c0_81], %168 {strides = array<i32>} : memref<32x1xf32, #tpu.memory_space<vmem>>, vector<32x1xf32>,
    } else {
    }
    %4 = tpu.assume_multiple %0, 128 : i32
    %c0 = arith.constant 0 : index
    %c0_1 = arith.constant 0 : index
    %5 = arith.index_cast %4 : i32 to index
    %6 = vector.load %arg2[%c0, %c0_1, %5] : memref<1x1x512xf32, #tpu.memory_space<vmem>>, vector<1x1x256xf32>
    %7 = vector.shape_cast %6 : vector<1x1x256xf32> to vector<1x256xf32>
    %8 = tpu.iota {dimensions = array<i32: 1>} : vector<1x256xi32>
    %c7_i32 = arith.constant 7 : i32
    %9 = arith.subi %0, %c7_i32 : i32
    %10 = vector.broadcast %9 : i32 to vector<1x256xi32>
    %11 = arith.addi %8, %10 : vector<1x256xi32>
    %c0_i32_2 = arith.constant 0 : i32
    %12 = vector.broadcast %c0_i32_2 : i32 to vector<1x256xi32>
    %13 = arith.cmpi sge, %11, %12 : vector<1x256xi32>
    %c300_i32 = arith.constant 300 : i32
    %14 = vector.broadcast %c300_i32 : i32 to vector<1x256xi32>
    %15 = arith.cmpi slt, %11, %14 : vector<1x256xi32>
    %16 = arith.andi %13, %15 : vector<1x256xi1>
    %c0_3 = arith.constant 0 : index
    %c0_4 = arith.constant 0 : index
    %17 = vector.load %arg3[%c0_3, %c0_4] : memref<32x3xf32, #tpu.memory_space<vmem>>, vector<32x3xf32>
    %c0_5 = arith.constant 0 : index
    %c0_6 = arith.constant 0 : index
    %18 = vector.load %arg4[%c0_5, %c0_6] : memref<32x1xf32, #tpu.memory_space<vmem>>, vector<32x1xf32>
    %c1_i32 = arith.constant 1 : i32
    %19 = tpu.dynamic_rotate %7 by %c1_i32 dim 1 : vector<1x256xf32>, i32 -> vector<1x256xf32>
    %c255_i32 = arith.constant 255 : i32
    %20 = tpu.dynamic_rotate %7 by %c255_i32 dim 1 : vector<1x256xf32>, i32 -> vector<1x256xf32>
    %21 = vector.extract_strided_slice %17 {offsets = [0, 0], sizes = [32, 1], strides = [1, 1]} : vector<32x3xf32> to vector<32x1xf32>
    %22 = vector.broadcast %21 : vector<32x1xf32> to vector<32x256xf32>
    %23 = vector.broadcast %19 : vector<1x256xf32> to vector<32x256xf32>
    %24 = arith.mulf %22, %23 : vector<32x256xf32>
    %25 = vector.extract_strided_slice %17 {offsets = [0, 1], sizes = [32, 1], strides = [1, 1]} : vector<32x3xf32> to vector<32x1xf32>
    %26 = vector.broadcast %25 : vector<32x1xf32> to vector<32x256xf32>
    %27 = vector.broadcast %7 : vector<1x256xf32> to vector<32x256xf32>
    %28 = arith.mulf %26, %27 : vector<32x256xf32>
    %29 = arith.addf %24, %28 : vector<32x256xf32>
    %30 = vector.extract_strided_slice %17 {offsets = [0, 2], sizes = [32, 1], strides = [1, 1]} : vector<32x3xf32> to vector<32x1xf32>
    %31 = vector.broadcast %30 : vector<32x1xf32> to vector<32x256xf32>
    %32 = vector.broadcast %20 : vector<1x256xf32> to vector<32x256xf32>
    %33 = arith.mulf %31, %32 : vector<32x256xf32>
    %34 = arith.addf %29, %33 : vector<32x256xf32>
    %35 = vector.broadcast %18 : vector<32x1xf32> to vector<32x256xf32>
    %36 = arith.addf %34, %35 : vector<32x256xf32>
    %cst = arith.constant 0.000000e+00 : f32
    %37 = vector.broadcast %cst : f32 to vector<32x256xf32>
    %38 = arith.cmpf oge, %36, %37 : vector<32x256xf32>
    %cst_7 = arith.constant 0.00999999977 : f32
    %39 = vector.broadcast %cst_7 : f32 to vector<32x256xf32>
    %40 = arith.mulf %39, %36 : vector<32x256xf32>
    %41 = arith.select %38, %36, %40 : vector<32x256xi1>, vector<32x256xf32>
    %cst_8 = arith.constant 0.000000e+00 : f32
    %42 = vector.shape_cast %16 : vector<1x256xi1> to vector<1x256xi1>
    %43 = vector.broadcast %42 : vector<1x256xi1> to vector<32x256xi1>
    %44 = vector.broadcast %cst_8 : f32 to vector<32x256xf32>
    %45 = arith.select %43, %41, %44 : vector<32x256xi1>, vector<32x256xf32>
    %c0_9 = arith.constant 0 : index
    %c0_10 = arith.constant 0 : index
    %46 = vector.load %arg5[%c0_9, %c0_10] : memref<32x96xf32, #tpu.memory_space<vmem>>, vector<32x96xf32>
    %c0_11 = arith.constant 0 : index
    %c0_12 = arith.constant 0 : index
    %47 = vector.load %arg6[%c0_11, %c0_12] : memref<32x1xf32, #tpu.memory_space<vmem>>, vector<32x1xf32>
    %c1_i32_13 = arith.constant 1 : i32
    %48 = tpu.dynamic_rotate %45 by %c1_i32_13 dim 1 : vector<32x256xf32>, i32 -> vector<32x256xf32>
    %c255_i32_14 = arith.constant 255 : i32
    %49 = tpu.dynamic_rotate %45 by %c255_i32_14 dim 1 : vector<32x256xf32>, i32 -> vector<32x256xf32>
    %50 = tpu.concatenate %48, %45, %49 in 0 : vector<32x256xf32>, vector<32x256xf32>, vector<32x256xf32> -> vector<96x256xf32>
    %cst_15 = arith.constant dense<0.000000e+00> : vector<32x256xf32>
    %51 = tpu.matmul %46, %50, %cst_15 {dimension_numbers = #tpu.dot_dimension_numbers<[1], [0], [0], [1], [0, 0, 1, 1], [], []>} : vector<32x96xf32>, vector<96x256xf32>, vector<32x256xf32> -> vector<32x256xf32>
    %52 = vector.broadcast %47 : vector<32x1xf32> to vector<32x256xf32>
    %53 = arith.addf %51, %52 : vector<32x256xf32>
    %cst_16 = arith.constant 0.000000e+00 : f32
    %54 = vector.broadcast %cst_16 : f32 to vector<32x256xf32>
    %55 = arith.cmpf oge, %53, %54 : vector<32x256xf32>
    %cst_17 = arith.constant 0.00999999977 : f32
    %56 = vector.broadcast %cst_17 : f32 to vector<32x256xf32>
    %57 = arith.mulf %56, %53 : vector<32x256xf32>
    %58 = arith.select %55, %53, %57 : vector<32x256xi1>, vector<32x256xf32>
    %cst_18 = arith.constant 0.000000e+00 : f32
    %59 = vector.shape_cast %16 : vector<1x256xi1> to vector<1x256xi1>
    %60 = vector.broadcast %59 : vector<1x256xi1> to vector<32x256xi1>
    %61 = vector.broadcast %cst_18 : f32 to vector<32x256xf32>
    %62 = arith.select %60, %58, %61 : vector<32x256xi1>, vector<32x256xf32>
    %c0_19 = arith.constant 0 : index
    %c0_20 = arith.constant 0 : index
    %63 = vector.load %arg7[%c0_19, %c0_20] : memref<32x96xf32, #tpu.memory_space<vmem>>, vector<32x96xf32>
    %c0_21 = arith.constant 0 : index
    %c0_22 = arith.constant 0 : index
    %64 = vector.load %arg8[%c0_21, %c0_22] : memref<32x1xf32, #tpu.memory_space<vmem>>, vector<32x1xf32>
    %c1_i32_23 = arith.constant 1 : i32
    %65 = tpu.dynamic_rotate %62 by %c1_i32_23 dim 1 : vector<32x256xf32>, i32 -> vector<32x256xf32>
    %c255_i32_24 = arith.constant 255 : i32
    %66 = tpu.dynamic_rotate %62 by %c255_i32_24 dim 1 : vector<32x256xf32>, i32 -> vector<32x256xf32>
    %67 = tpu.concatenate %65, %62, %66 in 0 : vector<32x256xf32>, vector<32x256xf32>, vector<32x256xf32> -> vector<96x256xf32>
    %cst_25 = arith.constant dense<0.000000e+00> : vector<32x256xf32>
    %68 = tpu.matmul %63, %67, %cst_25 {dimension_numbers = #tpu.dot_dimension_numbers<[1], [0], [0], [1], [0, 0, 1, 1], [], []>} : vector<32x96xf32>, vector<96x256xf32>, vector<32x256xf32> -> vector<32x256xf32>
    %69 = vector.broadcast %64 : vector<32x1xf32> to vector<32x256xf32>
    %70 = arith.addf %68, %69 : vector<32x256xf32>
    %cst_26 = arith.constant 0.000000e+00 : f32
    %71 = vector.broadcast %cst_26 : f32 to vector<32x256xf32>
    %72 = arith.cmpf oge, %70, %71 : vector<32x256xf32>
    %cst_27 = arith.constant 0.00999999977 : f32
    %73 = vector.broadcast %cst_27 : f32 to vector<32x256xf32>
    %74 = arith.mulf %73, %70 : vector<32x256xf32>
    %75 = arith.select %72, %70, %74 : vector<32x256xi1>, vector<32x256xf32>
    %cst_28 = arith.constant 0.000000e+00 : f32
    %76 = vector.shape_cast %16 : vector<1x256xi1> to vector<1x256xi1>
    %77 = vector.broadcast %76 : vector<1x256xi1> to vector<32x256xi1>
    %78 = vector.broadcast %cst_28 : f32 to vector<32x256xf32>
    %79 = arith.select %77, %75, %78 : vector<32x256xi1>, vector<32x256xf32>
    %c0_29 = arith.constant 0 : index
    %c0_30 = arith.constant 0 : index
    %80 = vector.load %arg9[%c0_29, %c0_30] : memref<32x96xf32, #tpu.memory_space<vmem>>, vector<32x96xf32>
    %c0_31 = arith.constant 0 : index
    %c0_32 = arith.constant 0 : index
    %81 = vector.load %arg10[%c0_31, %c0_32] : memref<32x1xf32, #tpu.memory_space<vmem>>, vector<32x1xf32>
    %c1_i32_33 = arith.constant 1 : i32
    %82 = tpu.dynamic_rotate %79 by %c1_i32_33 dim 1 : vector<32x256xf32>, i32 -> vector<32x256xf32>
    %c255_i32_34 = arith.constant 255 : i32
    %83 = tpu.dynamic_rotate %79 by %c255_i32_34 dim 1 : vector<32x256xf32>, i32 -> vector<32x256xf32>
    %84 = tpu.concatenate %82, %79, %83 in 0 : vector<32x256xf32>, vector<32x256xf32>, vector<32x256xf32> -> vector<96x256xf32>
    %cst_35 = arith.constant dense<0.000000e+00> : vector<32x256xf32>
    %85 = tpu.matmul %80, %84, %cst_35 {dimension_numbers = #tpu.dot_dimension_numbers<[1], [0], [0], [1], [0, 0, 1, 1], [], []>} : vector<32x96xf32>, vector<96x256xf32>, vector<32x256xf32> -> vector<32x256xf32>
    %86 = vector.broadcast %81 : vector<32x1xf32> to vector<32x256xf32>
    %87 = arith.addf %85, %86 : vector<32x256xf32>
    %cst_36 = arith.constant 0.000000e+00 : f32
    %88 = vector.broadcast %cst_36 : f32 to vector<32x256xf32>
    %89 = arith.cmpf oge, %87, %88 : vector<32x256xf32>
    %cst_37 = arith.constant 0.00999999977 : f32
    %90 = vector.broadcast %cst_37 : f32 to vector<32x256xf32>
    %91 = arith.mulf %90, %87 : vector<32x256xf32>
    %92 = arith.select %89, %87, %91 : vector<32x256xi1>, vector<32x256xf32>
    %cst_38 = arith.constant 0.000000e+00 : f32
    %93 = vector.shape_cast %16 : vector<1x256xi1> to vector<1x256xi1>
    %94 = vector.broadcast %93 : vector<1x256xi1> to vector<32x256xi1>
    %95 = vector.broadcast %cst_38 : f32 to vector<32x256xf32>
    %96 = arith.select %94, %92, %95 : vector<32x256xi1>, vector<32x256xf32>
    %c0_39 = arith.constant 0 : index
    %c0_40 = arith.constant 0 : index
    %97 = vector.load %arg11[%c0_39, %c0_40] : memref<32x96xf32, #tpu.memory_space<vmem>>, vector<32x96xf32>
    %c0_41 = arith.constant 0 : index
    %c0_42 = arith.constant 0 : index
    %98 = vector.load %arg12[%c0_41, %c0_42] : memref<32x1xf32, #tpu.memory_space<vmem>>, vector<32x1xf32>
    %c1_i32_43 = arith.constant 1 : i32
    %99 = tpu.dynamic_rotate %96 by %c1_i32_43 dim 1 : vector<32x256xf32>, i32 -> vector<32x256xf32>
    %c255_i32_44 = arith.constant 255 : i32
    %100 = tpu.dynamic_rotate %96 by %c255_i32_44 dim 1 : vector<32x256xf32>, i32 -> vector<32x256xf32>
    %101 = tpu.concatenate %99, %96, %100 in 0 : vector<32x256xf32>, vector<32x256xf32>, vector<32x256xf32> -> vector<96x256xf32>
    %cst_45 = arith.constant dense<0.000000e+00> : vector<32x256xf32>
    %102 = tpu.matmul %97, %101, %cst_45 {dimension_numbers = #tpu.dot_dimension_numbers<[1], [0], [0], [1], [0, 0, 1, 1], [], []>} : vector<32x96xf32>, vector<96x256xf32>, vector<32x256xf32> -> vector<32x256xf32>
    %103 = vector.broadcast %98 : vector<32x1xf32> to vector<32x256xf32>
    %104 = arith.addf %102, %103 : vector<32x256xf32>
    %cst_46 = arith.constant 0.000000e+00 : f32
    %105 = vector.broadcast %cst_46 : f32 to vector<32x256xf32>
    %106 = arith.cmpf oge, %104, %105 : vector<32x256xf32>
    %cst_47 = arith.constant 0.00999999977 : f32
    %107 = vector.broadcast %cst_47 : f32 to vector<32x256xf32>
    %108 = arith.mulf %107, %104 : vector<32x256xf32>
    %109 = arith.select %106, %104, %108 : vector<32x256xi1>, vector<32x256xf32>
    %cst_48 = arith.constant 0.000000e+00 : f32
    %110 = vector.shape_cast %16 : vector<1x256xi1> to vector<1x256xi1>
    %111 = vector.broadcast %110 : vector<1x256xi1> to vector<32x256xi1>
    %112 = vector.broadcast %cst_48 : f32 to vector<32x256xf32>
    %113 = arith.select %111, %109, %112 : vector<32x256xi1>, vector<32x256xf32>
    %c0_49 = arith.constant 0 : index
    %c0_50 = arith.constant 0 : index
    %114 = vector.load %arg13[%c0_49, %c0_50] : memref<32x96xf32, #tpu.memory_space<vmem>>, vector<32x96xf32>
    %c0_51 = arith.constant 0 : index
    %c0_52 = arith.constant 0 : index
    %115 = vector.load %arg14[%c0_51, %c0_52] : memref<32x1xf32, #tpu.memory_space<vmem>>, vector<32x1xf32>
    %c1_i32_53 = arith.constant 1 : i32
    %116 = tpu.dynamic_rotate %113 by %c1_i32_53 dim 1 : vector<32x256xf32>, i32 -> vector<32x256xf32>
    %c255_i32_54 = arith.constant 255 : i32
    %117 = tpu.dynamic_rotate %113 by %c255_i32_54 dim 1 : vector<32x256xf32>, i32 -> vector<32x256xf32>
    %118 = tpu.concatenate %116, %113, %117 in 0 : vector<32x256xf32>, vector<32x256xf32>, vector<32x256xf32> -> vector<96x256xf32>
    %cst_55 = arith.constant dense<0.000000e+00> : vector<32x256xf32>
    %119 = tpu.matmul %114, %118, %cst_55 {dimension_numbers = #tpu.dot_dimension_numbers<[1], [0], [0], [1], [0, 0, 1, 1], [], []>} : vector<32x96xf32>, vector<96x256xf32>, vector<32x256xf32> -> vector<32x256xf32>
    %120 = vector.broadcast %115 : vector<32x1xf32> to vector<32x256xf32>
    %121 = arith.addf %119, %120 : vector<32x256xf32>
    %cst_56 = arith.constant 0.000000e+00 : f32
    %122 = vector.broadcast %cst_56 : f32 to vector<32x256xf32>
    %123 = arith.cmpf oge, %121, %122 : vector<32x256xf32>
    %cst_57 = arith.constant 0.00999999977 : f32
    %124 = vector.broadcast %cst_57 : f32 to vector<32x256xf32>
    %125 = arith.mulf %124, %121 : vector<32x256xf32>
    %126 = arith.select %123, %121, %125 : vector<32x256xi1>, vector<32x256xf32>
    %cst_58 = arith.constant 0.000000e+00 : f32
    %127 = vector.shape_cast %16 : vector<1x256xi1> to vector<1x256xi1>
    %128 = vector.broadcast %127 : vector<1x256xi1> to vector<32x256xi1>
    %129 = vector.broadcast %cst_58 : f32 to vector<32x256xf32>
    %130 = arith.select %128, %126, %129 : vector<32x256xi1>, vector<32x256xf32>
    %c0_59 = arith.constant 0 : index
    %c0_60 = arith.constant 0 : index
    %131 = vector.load %arg15[%c0_59, %c0_60] : memref<32x96xf32, #tpu.memory_space<vmem>>, vector<32x96xf32>
    %c0_61 = arith.constant 0 : index
    %c0_62 = arith.constant 0 : index
    %132 = vector.load %arg16[%c0_61, %c0_62] : memref<32x1xf32, #tpu.memory_space<vmem>>, vector<32x1xf32>
    %c1_i32_63 = arith.constant 1 : i32
    %133 = tpu.dynamic_rotate %130 by %c1_i32_63 dim 1 : vector<32x256xf32>, i32 -> vector<32x256xf32>
    %c255_i32_64 = arith.constant 255 : i32
    %134 = tpu.dynamic_rotate %130 by %c255_i32_64 dim 1 : vector<32x256xf32>, i32 -> vector<32x256xf32>
    %135 = tpu.concatenate %133, %130, %134 in 0 : vector<32x256xf32>, vector<32x256xf32>, vector<32x256xf32> -> vector<96x256xf32>
    %cst_65 = arith.constant dense<0.000000e+00> : vector<32x256xf32>
    %136 = tpu.matmul %131, %135, %cst_65 {dimension_numbers = #tpu.dot_dimension_numbers<[1], [0], [0], [1], [0, 0, 1, 1], [], []>} : vector<32x96xf32>, vector<96x256xf32>, vector<32x256xf32> -> vector<32x256xf32>
    %137 = vector.broadcast %132 : vector<32x1xf32> to vector<32x256xf32>
    %138 = arith.addf %136, %137 : vector<32x256xf32>
    %cst_66 = arith.constant 0.000000e+00 : f32
    %139 = vector.broadcast %cst_66 : f32 to vector<32x256xf32>
    %140 = arith.cmpf oge, %138, %139 : vector<32x256xf32>
    %cst_67 = arith.constant 0.00999999977 : f32
    %141 = vector.broadcast %cst_67 : f32 to vector<32x256xf32>
    %142 = arith.mulf %141, %138 : vector<32x256xf32>
    %143 = arith.select %140, %138, %142 : vector<32x256xi1>, vector<32x256xf32>
    %cst_68 = arith.constant 0.000000e+00 : f32
    %144 = vector.shape_cast %16 : vector<1x256xi1> to vector<1x256xi1>
    %145 = vector.broadcast %144 : vector<1x256xi1> to vector<32x256xi1>
    %146 = vector.broadcast %cst_68 : f32 to vector<32x256xf32>
    %147 = arith.select %145, %143, %146 : vector<32x256xi1>, vector<32x256xf32>
    %c7_i32_69 = arith.constant 7 : i32
    %148 = vector.broadcast %c7_i32_69 : i32 to vector<1x256xi32>
    %149 = arith.cmpi sge, %8, %148 : vector<1x256xi32>
    %c135_i32 = arith.constant 135 : i32
    %150 = vector.broadcast %c135_i32 : i32 to vector<1x256xi32>
    %151 = arith.cmpi slt, %8, %150 : vector<1x256xi32>
    %152 = arith.andi %149, %151 : vector<1x256xi1>
    %c0_70 = arith.constant 0 : index
    %c0_71 = arith.constant 0 : index
    %153 = vector.load %arg20[%c0_70, %c0_71] : memref<32x1xf32, #tpu.memory_space<vmem>>, vector<32x1xf32>
    %cst_72 = arith.constant 0.000000e+00 : f32
    %154 = vector.shape_cast %152 : vector<1x256xi1> to vector<1x256xi1>
    %155 = vector.broadcast %154 : vector<1x256xi1> to vector<32x256xi1>
    %156 = vector.broadcast %cst_72 : f32 to vector<32x256xf32>
    %157 = arith.select %155, %147, %156 : vector<32x256xi1>, vector<32x256xf32>
    %cst_73 = arith.constant dense<0.000000e+00> : vector<32xf32>
    %158 = vector.multi_reduction <add>, %157, %cst_73 [1] : vector<32x256xf32> to vector<32xf32>
    %159 = vector.shape_cast %158 : vector<32xf32> to vector<32x1xf32>
    %160 = arith.addf %153, %159 : vector<32x1xf32>
    %c0_74 = arith.constant 0 : index
    %c0_75 = arith.constant 0 : index
    %161 = vector.load %arg20[%c0_74, %c0_75] : memref<32x1xf32, #tpu.memory_space<vmem>>, vector<32x1xf32>
    tpu.vector_store %arg20[%c0_74, %c0_75], %160 {strides = array<i32>} : memref<32x1xf32, #tpu.memory_space<vmem>>, vector<32x1xf32>,
    %c0_i32_76 = arith.constant 0 : i32
    %162 = arith.cmpi eq, %arg1, %c0_i32_76 : i32
    %163 = arith.extui %162 : i1 to i32
    %c0_i32_77 = arith.constant 0 : i32
    %164 = arith.cmpi ne, %163, %c0_i32_77 : i32
    scf.if %164 {
      %168 = vector.extract_strided_slice %147 {offsets = [0, 7], sizes = [32, 1], strides = [1, 1]} : vector<32x256xf32> to vector<32x1xf32>
      %c0_79 = arith.constant 0 : index
      %c0_80 = arith.constant 0 : index
      %169 = vector.load %arg21[%c0_79, %c0_80] : memref<32x1xf32, #tpu.memory_space<vmem>>, vector<32x1xf32>
      tpu.vector_store %arg21[%c0_79, %c0_80], %168 {strides = array<i32>} : memref<32x1xf32, #tpu.memory_space<vmem>>, vector<32x1xf32>,
    } else {
    }
    %c2_i32 = arith.constant 2 : i32
    %165 = arith.cmpi eq, %arg1, %c2_i32 : i32
    %166 = arith.extui %165 : i1 to i32
    %c0_i32_78 = arith.constant 0 : i32
    %167 = arith.cmpi ne, %166, %c0_i32_78 : i32
    scf.if %167 {
      %c0_79 = arith.constant 0 : index
      %c0_80 = arith.constant 0 : index
      %168 = vector.load %arg17[%c0_79, %c0_80] : memref<8x96xf32, #tpu.memory_space<vmem>>, vector<8x96xf32>
      %c0_81 = arith.constant 0 : index
      %c0_82 = arith.constant 0 : index
      %169 = vector.load %arg18[%c0_81, %c0_82] : memref<8x1xf32, #tpu.memory_space<vmem>>, vector<8x1xf32>
      %c0_83 = arith.constant 0 : index
      %c0_84 = arith.constant 0 : index
      %170 = vector.load %arg20[%c0_83, %c0_84] : memref<32x1xf32, #tpu.memory_space<vmem>>, vector<32x1xf32>
      %c0_85 = arith.constant 0 : index
      %c0_86 = arith.constant 0 : index
      %171 = vector.load %arg21[%c0_85, %c0_86] : memref<32x1xf32, #tpu.memory_space<vmem>>, vector<32x1xf32>
      %172 = vector.extract_strided_slice %147 {offsets = [0, 50], sizes = [32, 1], strides = [1, 1]} : vector<32x256xf32> to vector<32x1xf32>
      %173 = arith.subf %170, %172 : vector<32x1xf32>
      %174 = arith.subf %170, %171 : vector<32x1xf32>
      %175 = tpu.concatenate %173, %170, %174 in 0 : vector<32x1xf32>, vector<32x1xf32>, vector<32x1xf32> -> vector<96x1xf32>
      %cst_87 = arith.constant 0.00333333341 : f32
      %176 = vector.broadcast %cst_87 : f32 to vector<96x1xf32>
      %177 = arith.mulf %175, %176 : vector<96x1xf32>
      %cst_88 = arith.constant dense<0.000000e+00> : vector<8x1xf32>
      %178 = tpu.matmul %168, %177, %cst_88 {dimension_numbers = #tpu.dot_dimension_numbers<[1], [0], [0], [1], [0, 0, 1, 1], [], []>} : vector<8x96xf32>, vector<96x1xf32>, vector<8x1xf32> -> vector<8x1xf32>
      %179 = arith.addf %178, %169 : vector<8x1xf32>
      %c0_89 = arith.constant 0 : index
      %c0_90 = arith.constant 0 : index
      %c0_91 = arith.constant 0 : index
      %180 = vector.load %arg19[%c0_89, %c0_90, %c0_91] : memref<1x8x1xf32, #tpu.memory_space<vmem>>, vector<1x8x1xf32>
      %181 = vector.shape_cast %180 : vector<1x8x1xf32> to vector<8x1xf32>
      %182 = vector.shape_cast %179 : vector<8x1xf32> to vector<1x8x1xf32>
      tpu.vector_store %arg19[%c0_89, %c0_90, %c0_91], %182 {strides = array<i32>} : memref<1x8x1xf32, #tpu.memory_space<vmem>>, vector<1x8x1xf32>,
    } else {
    }
    return
  }
  func.func @transform_0(%arg0: i32, %arg1: i32) -> (i32, i32, i32) {
    %c0_i32 = arith.constant 0 : i32
    %c0_i32_0 = arith.constant 0 : i32
    %c0_i32_1 = arith.constant 0 : i32
    return %arg0, %c0_i32, %c0_i32_0 : i32, i32, i32
  }
  func.func @transform_1(%arg0: i32, %arg1: i32) -> (i32, i32) {
    %c0_i32 = arith.constant 0 : i32
    %c0_i32_0 = arith.constant 0 : i32
    %c0_i32_1 = arith.constant 0 : i32
    return %c0_i32, %c0_i32_0 : i32, i32
  }
  func.func @transform_2(%arg0: i32, %arg1: i32) -> (i32, i32) {
    %c0_i32 = arith.constant 0 : i32
    %c0_i32_0 = arith.constant 0 : i32
    %c0_i32_1 = arith.constant 0 : i32
    return %c0_i32, %c0_i32_0 : i32, i32
  }
  func.func @transform_3(%arg0: i32, %arg1: i32) -> (i32, i32) {
    %c0_i32 = arith.constant 0 : i32
    %c0_i32_0 = arith.constant 0 : i32
    %c0_i32_1 = arith.constant 0 : i32
    return %c0_i32, %c0_i32_0 : i32, i32
  }
  func.func @transform_4(%arg0: i32, %arg1: i32) -> (i32, i32) {
    %c0_i32 = arith.constant 0 : i32
    %c0_i32_0 = arith.constant 0 : i32
    %c0_i32_1 = arith.constant 0 : i32
    return %c0_i32, %c0_i32_0 : i32, i32
  }
  func.func @transform_5(%arg0: i32, %arg1: i32) -> (i32, i32) {
    %c0_i32 = arith.constant 0 : i32
    %c0_i32_0 = arith.constant 0 : i32
    %c0_i32_1 = arith.constant 0 : i32
    return %c0_i32, %c0_i32_0 : i32, i32
  }
  func.func @transform_6(%arg0: i32, %arg1: i32) -> (i32, i32) {
    %c0_i32 = arith.constant 0 : i32
    %c0_i32_0 = arith.constant 0 : i32
    %c0_i32_1 = arith.constant 0 : i32
    return %c0_i32, %c0_i32_0 : i32, i32
  }
  func.func @transform_7(%arg0: i32, %arg1: i32) -> (i32, i32) {
    %c0_i32 = arith.constant 0 : i32
    %c0_i32_0 = arith.constant 0 : i32
    %c0_i32_1 = arith.constant 0 : i32
    return %c0_i32, %c0_i32_0 : i32, i32
  }
  func.func @transform_8(%arg0: i32, %arg1: i32) -> (i32, i32) {
    %c0_i32 = arith.constant 0 : i32
    %c0_i32_0 = arith.constant 0 : i32
    %c0_i32_1 = arith.constant 0 : i32
    return %c0_i32, %c0_i32_0 : i32, i32
  }
  func.func @transform_9(%arg0: i32, %arg1: i32) -> (i32, i32) {
    %c0_i32 = arith.constant 0 : i32
    %c0_i32_0 = arith.constant 0 : i32
    %c0_i32_1 = arith.constant 0 : i32
    return %c0_i32, %c0_i32_0 : i32, i32
  }
  func.func @transform_10(%arg0: i32, %arg1: i32) -> (i32, i32) {
    %c0_i32 = arith.constant 0 : i32
    %c0_i32_0 = arith.constant 0 : i32
    %c0_i32_1 = arith.constant 0 : i32
    return %c0_i32, %c0_i32_0 : i32, i32
  }
  func.func @transform_11(%arg0: i32, %arg1: i32) -> (i32, i32) {
    %c0_i32 = arith.constant 0 : i32
    %c0_i32_0 = arith.constant 0 : i32
    %c0_i32_1 = arith.constant 0 : i32
    return %c0_i32, %c0_i32_0 : i32, i32
  }
  func.func @transform_12(%arg0: i32, %arg1: i32) -> (i32, i32) {
    %c0_i32 = arith.constant 0 : i32
    %c0_i32_0 = arith.constant 0 : i32
    %c0_i32_1 = arith.constant 0 : i32
    return %c0_i32, %c0_i32_0 : i32, i32
  }
  func.func @transform_13(%arg0: i32, %arg1: i32) -> (i32, i32) {
    %c0_i32 = arith.constant 0 : i32
    %c0_i32_0 = arith.constant 0 : i32
    %c0_i32_1 = arith.constant 0 : i32
    return %c0_i32, %c0_i32_0 : i32, i32
  }
  func.func @transform_14(%arg0: i32, %arg1: i32) -> (i32, i32) {
    %c0_i32 = arith.constant 0 : i32
    %c0_i32_0 = arith.constant 0 : i32
    %c0_i32_1 = arith.constant 0 : i32
    return %c0_i32, %c0_i32_0 : i32, i32
  }
  func.func @transform_15(%arg0: i32, %arg1: i32) -> (i32, i32) {
    %c0_i32 = arith.constant 0 : i32
    %c0_i32_0 = arith.constant 0 : i32
    %c0_i32_1 = arith.constant 0 : i32
    return %c0_i32, %c0_i32_0 : i32, i32
  }
  func.func @transform_16(%arg0: i32, %arg1: i32) -> (i32, i32) {
    %c0_i32 = arith.constant 0 : i32
    %c0_i32_0 = arith.constant 0 : i32
    %c0_i32_1 = arith.constant 0 : i32
    return %c0_i32, %c0_i32_0 : i32, i32
  }
  func.func @transform_17(%arg0: i32, %arg1: i32) -> (i32, i32, i32) {
    %c0_i32 = arith.constant 0 : i32
    %c0_i32_0 = arith.constant 0 : i32
    %c0_i32_1 = arith.constant 0 : i32
    return %arg0, %c0_i32, %c0_i32_0 : i32, i32, i32
  }
}

</mosaic_0001>

<llo_original>
// kernel: decoder_wav_forward.1
$region0: #{decoder_wav_forward.1}
  #allocation0 [shape = 'u32[]', space=smem, size = 0x4, offset = 0x4, fixed_abs, tag = 'smem constant byte address 0x4 - core index']
  #allocation1 [shape = 'u32[144,128]{1,0:T(1,128)}', space=vmem, size = 0x12000, scoped, tag = 'internal scratch']
  #allocation2 [shape = 'f32[32,1]{1,0:T(8,128)}', space=vmem, size = 0x4000, scoped, tag = 'scratch operand']
  #allocation3 [shape = 'f32[32,1]{1,0:T(8,128)}', space=vmem, size = 0x4000, scoped, tag = 'scratch operand']
  %s0 = inlined_call_operand.vmem [shape: f32[2,1,512], index: 0, kind: input, shape index: {}]
  %s1 = inlined_call_operand.vmem [shape: f32[32,3], index: 1, kind: input, shape index: {}]
  %s2 = inlined_call_operand.vmem [shape: f32[32,1], index: 2, kind: input, shape index: {}]
  %s3 = inlined_call_operand.vmem [shape: f32[32,96], index: 3, kind: input, shape index: {}]
  %s4 = inlined_call_operand.vmem [shape: f32[32,1], index: 4, kind: input, shape index: {}]
  %s5 = inlined_call_operand.vmem [shape: f32[32,96], index: 5, kind: input, shape index: {}]
  %s6 = inlined_call_operand.vmem [shape: f32[32,1], index: 6, kind: input, shape index: {}]
  %s7 = inlined_call_operand.vmem [shape: f32[32,96], index: 7, kind: input, shape index: {}]
  %s8 = inlined_call_operand.vmem [shape: f32[32,1], index: 8, kind: input, shape index: {}]
  %s9 = inlined_call_operand.vmem [shape: f32[32,96], index: 9, kind: input, shape index: {}]
  %s10 = inlined_call_operand.vmem [shape: f32[32,1], index: 10, kind: input, shape index: {}]
  %s11 = inlined_call_operand.vmem [shape: f32[32,96], index: 11, kind: input, shape index: {}]
  %s12 = inlined_call_operand.vmem [shape: f32[32,1], index: 12, kind: input, shape index: {}]
  %s13 = inlined_call_operand.vmem [shape: f32[32,96], index: 13, kind: input, shape index: {}]
  %s14 = inlined_call_operand.vmem [shape: f32[32,1], index: 14, kind: input, shape index: {}]
  %s15 = inlined_call_operand.vmem [shape: f32[8,96], index: 15, kind: input, shape index: {}]
  %s16 = inlined_call_operand.vmem [shape: f32[8,1], index: 16, kind: input, shape index: {}]
  %s17 = inlined_call_operand.vmem [shape: f32[2,8,1], index: 17, kind: output, shape index: {}]
  %s18 = sld [smem:[#allocation0]]
  $region113: #{decoder_wav_forward.1} parent=0
    _
  %s20 = ssub.s32 1, %s18
  %s21 = scalar_select 0, %s20, %s18
  loop: start=0, step=1, limit=8
  $region2: #{decoder_wav_forward.1} parent=0 // loop_pre_header
    _
  $region3: #{decoder_wav_forward.1} parent=0 // loop_header
    %s23 = sphi 0, %s27
    %p24 = scmp.ge.s32.totalorder %s23, 8
    %s30 = sphi 0, %s42
    %s31 = sphi 0, %s38
    %s32 = sphi 0, %s30
    %s33 = sphi 0, %s31
    %s34 = sphi 0, %s32
    %s35 = sphi 0, %s33
    %s45 = sphi 0, %s47
    %s48 = sphi 0, %s45
    %s49 = sphi 0, %s48
    %s65 = sphi 0, %s49
    %s69 = sphi 0, %s69
    %s71 = sphi 0, %s69
    %s72 = sphi 0, %s71
    %s86 = sphi 0, %s72
    %s90 = sphi 0, %s90
    %s92 = sphi 0, %s90
    %s93 = sphi 0, %s92
    %s107 = sphi 0, %s93
    %s111 = sphi 0, %s111
    %s113 = sphi 0, %s111
    %s114 = sphi 0, %s113
    %s128 = sphi 0, %s114
    %s132 = sphi 0, %s132
    %s134 = sphi 0, %s132
    %s135 = sphi 0, %s134
    %s149 = sphi 0, %s135
    %s153 = sphi 0, %s153
    %s155 = sphi 0, %s153
    %s156 = sphi 0, %s155
    %s170 = sphi 0, %s156
    %s174 = sphi 0, %s174
    %s176 = sphi 0, %s174
    %s177 = sphi 0, %s176
    %s191 = sphi 0, %s177
    %s195 = sphi 0, %s195
    %s197 = sphi 0, %s195
    %s198 = sphi 0, %s197
    %s212 = sphi 0, %s198
    %s216 = sphi 0, %s216
    %s218 = sphi 0, %s216
    %s219 = sphi 0, %s218
    %s233 = sphi 0, %s219
    %s237 = sphi 0, %s237
    %s239 = sphi 0, %s237
    %s240 = sphi 0, %s239
    %s254 = sphi 0, %s240
    %s258 = sphi 0, %s258
    %s260 = sphi 0, %s258
    %s261 = sphi 0, %s260
    %s275 = sphi 0, %s261
    %s279 = sphi 0, %s279
    %s281 = sphi 0, %s279
    %s282 = sphi 0, %s281
    %s296 = sphi 0, %s282
    %s300 = sphi 0, %s300
    %s302 = sphi 0, %s300
    %s303 = sphi 0, %s302
    %s317 = sphi 0, %s303
    %s321 = sphi 0, %s321
    %s323 = sphi 0, %s321
    %s324 = sphi 0, %s323
    %s338 = sphi 0, %s324
    %s342 = sphi 0, %s342
    %s344 = sphi 0, %s342
    %s345 = sphi 0, %s344
    %s359 = sphi 0, %s345
    %s363 = sphi 0, %s363
    %s365 = sphi 0, %s363
    %s366 = sphi 0, %s365
    %s380 = sphi 0, %s366
    %s384 = sphi 0, %s384
    %s386 = sphi 0, %s384
    %s387 = sphi 0, %s386
    %s401 = sphi 0, %s387
    %s407 = sphi 0, %s409
    %s410 = sphi 0, %s407
    %s411 = sphi 0, %s410
    %s427 = sphi 0, %s411
  $region4: #{decoder_wav_forward.1} parent=0 // loop_header_branch
    %26 = sbr.rel (%p24) target = $region8
  $region5: #{decoder_wav_forward.1} parent=0 // loop_body
    %s28 = ssub.s32 %s23, 1
    %s29 = ssub.s32 %s23, 2
    %s36 = sadd.s32 1, %s31
    %p37 = scmp.ge.s32.totalorder %s36, 3
    %s38 = scalar_select %p37, 0, %s36
    %s39 = sadd.s32 1, %s30
    %s40 = scalar_select %p37, %s39, %s30
    %p41 = scmp.ge.s32.totalorder %s40, 2
    %s42 = scalar_select %p41, 0, %s40
    %s43 = ssub.s32 %s30, %s42
    %p44 = scmp.eq.s32.totalorder %s43, 0
    %s46 = sadd.s32 %s45, 1
    %s47 = scalar_select %p44, %s45, %s46
    %p50 = pneg %p44
    %p51 = scmp.eq.s32.totalorder %s23, 5
    %p52 = por %p50, %p51
    %p53 = scmp.ne.s32.totalorder %s45, %s48
    %p54 = scmp.eq.s32.totalorder %s23, 0
    %p55 = por %p53, %p54
    %p56 = scmp.ne.s32.totalorder %s45, %s48
    %p57 = scmp.eq.s32.totalorder %s28, 5
    %p58 = por %p56, %p57
    %p59 = scmp.ne.s32.totalorder %s48, %s49
    %p60 = scmp.eq.s32.totalorder %s28, 0
    %p61 = por %p59, %p60
    %p62 = scmp.ne.s32.totalorder %s48, %s49
    %p63 = scmp.eq.s32.totalorder %s29, 5
    %p64 = por %p62, %p63
    %p66 = scmp.ne.s32.totalorder %s49, %s65
    %p67 = scmp.eq.s32.totalorder %s29, 0
    %p68 = por %p66, %p67
    %s70 = sadd.s32 %s69, 1
    %p73 = scmp.eq.s32.totalorder %s23, 5
    %p74 = scmp.ne.s32.totalorder %s69, %s71
    %p75 = scmp.eq.s32.totalorder %s23, 0
    %p76 = por %p74, %p75
    %p77 = scmp.ne.s32.totalorder %s69, %s71
    %p78 = scmp.eq.s32.totalorder %s28, 5
    %p79 = por %p77, %p78
    %p80 = scmp.ne.s32.totalorder %s71, %s72
    %p81 = scmp.eq.s32.totalorder %s28, 0
    %p82 = por %p80, %p81
    %p83 = scmp.ne.s32.totalorder %s71, %s72
    %p84 = scmp.eq.s32.totalorder %s29, 5
    %p85 = por %p83, %p84
    %p87 = scmp.ne.s32.totalorder %s72, %s86
    %p88 = scmp.eq.s32.totalorder %s29, 0
    %p89 = por %p87, %p88
    %s91 = sadd.s32 %s90, 1
    %p94 = scmp.eq.s32.totalorder %s23, 5
    %p95 = scmp.ne.s32.totalorder %s90, %s92
    %p96 = scmp.eq.s32.totalorder %s23, 0
    %p97 = por %p95, %p96
    %p98 = scmp.ne.s32.totalorder %s90, %s92
    %p99 = scmp.eq.s32.totalorder %s28, 5
    %p100 = por %p98, %p99
    %p101 = scmp.ne.s32.totalorder %s92, %s93
    %p102 = scmp.eq.s32.totalorder %s28, 0
    %p103 = por %p101, %p102
    %p104 = scmp.ne.s32.totalorder %s92, %s93
    %p105 = scmp.eq.s32.totalorder %s29, 5
    %p106 = por %p104, %p105
    %p108 = scmp.ne.s32.totalorder %s93, %s107
    %p109 = scmp.eq.s32.totalorder %s29, 0
    %p110 = por %p108, %p109
    %s112 = sadd.s32 %s111, 1
    %p115 = scmp.eq.s32.totalorder %s23, 5
    %p116 = scmp.ne.s32.totalorder %s111, %s113
    %p117 = scmp.eq.s32.totalorder %s23, 0
    %p118 = por %p116, %p117
    %p119 = scmp.ne.s32.totalorder %s111, %s113
    %p120 = scmp.eq.s32.totalorder %s28, 5
    %p121 = por %p119, %p120
    %p122 = scmp.ne.s32.totalorder %s113, %s114
    %p123 = scmp.eq.s32.totalorder %s28, 0
    %p124 = por %p122, %p123
    %p125 = scmp.ne.s32.totalorder %s113, %s114
    %p126 = scmp.eq.s32.totalorder %s29, 5
    %p127 = por %p125, %p126
    %p129 = scmp.ne.s32.totalorder %s114, %s128
    %p130 = scmp.eq.s32.totalorder %s29, 0
    %p131 = por %p129, %p130
    %s133 = sadd.s32 %s132, 1
    %p136 = scmp.eq.s32.totalorder %s23, 5
    %p137 = scmp.ne.s32.totalorder %s132, %s134
    %p138 = scmp.eq.s32.totalorder %s23, 0
    %p139 = por %p137, %p138
    %p140 = scmp.ne.s32.totalorder %s132, %s134
    %p141 = scmp.eq.s32.totalorder %s28, 5
    %p142 = por %p140, %p141
    %p143 = scmp.ne.s32.totalorder %s134, %s135
    %p144 = scmp.eq.s32.totalorder %s28, 0
    %p145 = por %p143, %p144
    %p146 = scmp.ne.s32.totalorder %s134, %s135
    %p147 = scmp.eq.s32.totalorder %s29, 5
    %p148 = por %p146, %p147
    %p150 = scmp.ne.s32.totalorder %s135, %s149
    %p151 = scmp.eq.s32.totalorder %s29, 0
    %p152 = por %p150, %p151
    %s154 = sadd.s32 %s153, 1
    %p157 = scmp.eq.s32.totalorder %s23, 5
    %p158 = scmp.ne.s32.totalorder %s153, %s155
    %p159 = scmp.eq.s32.totalorder %s23, 0
    %p160 = por %p158, %p159
    %p161 = scmp.ne.s32.totalorder %s153, %s155
    %p162 = scmp.eq.s32.totalorder %s28, 5
    %p163 = por %p161, %p162
    %p164 = scmp.ne.s32.totalorder %s155, %s156
    %p165 = scmp.eq.s32.totalorder %s28, 0
    %p166 = por %p164, %p165
    %p167 = scmp.ne.s32.totalorder %s155, %s156
    %p168 = scmp.eq.s32.totalorder %s29, 5
    %p169 = por %p167, %p168
    %p171 = scmp.ne.s32.totalorder %s156, %s170
    %p172 = scmp.eq.s32.totalorder %s29, 0
    %p173 = por %p171, %p172
    %s175 = sadd.s32 %s174, 1
    %p178 = scmp.eq.s32.totalorder %s23, 5
    %p179 = scmp.ne.s32.totalorder %s174, %s176
    %p180 = scmp.eq.s32.totalorder %s23, 0
    %p181 = por %p179, %p180
    %p182 = scmp.ne.s32.totalorder %s174, %s176
    %p183 = scmp.eq.s32.totalorder %s28, 5
    %p184 = por %p182, %p183
    %p185 = scmp.ne.s32.totalorder %s176, %s177
    %p186 = scmp.eq.s32.totalorder %s28, 0
    %p187 = por %p185, %p186
    %p188 = scmp.ne.s32.totalorder %s176, %s177
    %p189 = scmp.eq.s32.totalorder %s29, 5
    %p190 = por %p188, %p189
    %p192 = scmp.ne.s32.totalorder %s177, %s191
    %p193 = scmp.eq.s32.totalorder %s29, 0
    %p194 = por %p192, %p193
    %s196 = sadd.s32 %s195, 1
    %p199 = scmp.eq.s32.totalorder %s23, 5
    %p200 = scmp.ne.s32.totalorder %s195, %s197
    %p201 = scmp.eq.s32.totalorder %s23, 0
    %p202 = por %p200, %p201
    %p203 = scmp.ne.s32.totalorder %s195, %s197
    %p204 = scmp.eq.s32.totalorder %s28, 5
    %p205 = por %p203, %p204
    %p206 = scmp.ne.s32.totalorder %s197, %s198
    %p207 = scmp.eq.s32.totalorder %s28, 0
    %p208 = por %p206, %p207
    %p209 = scmp.ne.s32.totalorder %s197, %s198
    %p210 = scmp.eq.s32.totalorder %s29, 5
    %p211 = por %p209, %p210
    %p213 = scmp.ne.s32.totalorder %s198, %s212
    %p214 = scmp.eq.s32.totalorder %s29, 0
    %p215 = por %p213, %p214
    %s217 = sadd.s32 %s216, 1
    %p220 = scmp.eq.s32.totalorder %s23, 5
    %p221 = scmp.ne.s32.totalorder %s216, %s218
    %p222 = scmp.eq.s32.totalorder %s23, 0
    %p223 = por %p221, %p222
    %p224 = scmp.ne.s32.totalorder %s216, %s218
    %p225 = scmp.eq.s32.totalorder %s28, 5
    %p226 = por %p224, %p225
    %p227 = scmp.ne.s32.totalorder %s218, %s219
    %p228 = scmp.eq.s32.totalorder %s28, 0
    %p229 = por %p227, %p228
    %p230 = scmp.ne.s32.totalorder %s218, %s219
    %p231 = scmp.eq.s32.totalorder %s29, 5
    %p232 = por %p230, %p231
    %p234 = scmp.ne.s32.totalorder %s219, %s233
    %p235 = scmp.eq.s32.totalorder %s29, 0
    %p236 = por %p234, %p235
    %s238 = sadd.s32 %s237, 1
    %p241 = scmp.eq.s32.totalorder %s23, 5
    %p242 = scmp.ne.s32.totalorder %s237, %s239
    %p243 = scmp.eq.s32.totalorder %s23, 0
    %p244 = por %p242, %p243
    %p245 = scmp.ne.s32.totalorder %s237, %s239
    %p246 = scmp.eq.s32.totalorder %s28, 5
    %p247 = por %p245, %p246
    %p248 = scmp.ne.s32.totalorder %s239, %s240
    %p249 = scmp.eq.s32.totalorder %s28, 0
    %p250 = por %p248, %p249
    %p251 = scmp.ne.s32.totalorder %s239, %s240
    %p252 = scmp.eq.s32.totalorder %s29, 5
    %p253 = por %p251, %p252
    %p255 = scmp.ne.s32.totalorder %s240, %s254
    %p256 = scmp.eq.s32.totalorder %s29, 0
    %p257 = por %p255, %p256
    %s259 = sadd.s32 %s258, 1
    %p262 = scmp.eq.s32.totalorder %s23, 5
    %p263 = scmp.ne.s32.totalorder %s258, %s260
    %p264 = scmp.eq.s32.totalorder %s23, 0
    %p265 = por %p263, %p264
    %p266 = scmp.ne.s32.totalorder %s258, %s260
    %p267 = scmp.eq.s32.totalorder %s28, 5
    %p268 = por %p266, %p267
    %p269 = scmp.ne.s32.totalorder %s260, %s261
    %p270 = scmp.eq.s32.totalorder %s28, 0
    %p271 = por %p269, %p270
    %p272 = scmp.ne.s32.totalorder %s260, %s261
    %p273 = scmp.eq.s32.totalorder %s29, 5
    %p274 = por %p272, %p273
    %p276 = scmp.ne.s32.totalorder %s261, %s275
    %p277 = scmp.eq.s32.totalorder %s29, 0
    %p278 = por %p276, %p277
    %s280 = sadd.s32 %s279, 1
    %p283 = scmp.eq.s32.totalorder %s23, 5
    %p284 = scmp.ne.s32.totalorder %s279, %s281
    %p285 = scmp.eq.s32.totalorder %s23, 0
    %p286 = por %p284, %p285
    %p287 = scmp.ne.s32.totalorder %s279, %s281
    %p288 = scmp.eq.s32.totalorder %s28, 5
    %p289 = por %p287, %p288
    %p290 = scmp.ne.s32.totalorder %s281, %s282
    %p291 = scmp.eq.s32.totalorder %s28, 0
    %p292 = por %p290, %p291
    %p293 = scmp.ne.s32.totalorder %s281, %s282
    %p294 = scmp.eq.s32.totalorder %s29, 5
    %p295 = por %p293, %p294
    %p297 = scmp.ne.s32.totalorder %s282, %s296
    %p298 = scmp.eq.s32.totalorder %s29, 0
    %p299 = por %p297, %p298
    %s301 = sadd.s32 %s300, 1
    %p304 = scmp.eq.s32.totalorder %s23, 5
    %p305 = scmp.ne.s32.totalorder %s300, %s302
    %p306 = scmp.eq.s32.totalorder %s23, 0
    %p307 = por %p305, %p306
    %p308 = scmp.ne.s32.totalorder %s300, %s302
    %p309 = scmp.eq.s32.totalorder %s28, 5
    %p310 = por %p308, %p309
    %p311 = scmp.ne.s32.totalorder %s302, %s303
    %p312 = scmp.eq.s32.totalorder %s28, 0
    %p313 = por %p311, %p312
    %p314 = scmp.ne.s32.totalorder %s302, %s303
    %p315 = scmp.eq.s32.totalorder %s29, 5
    %p316 = por %p314, %p315
    %p318 = scmp.ne.s32.totalorder %s303, %s317
    %p319 = scmp.eq.s32.totalorder %s29, 0
    %p320 = por %p318, %p319
    %s322 = sadd.s32 %s321, 1
    %p325 = scmp.eq.s32.totalorder %s23, 5
    %p326 = scmp.ne.s32.totalorder %s321, %s323
    %p327 = scmp.eq.s32.totalorder %s23, 0
    %p328 = por %p326, %p327
    %p329 = scmp.ne.s32.totalorder %s321, %s323
    %p330 = scmp.eq.s32.totalorder %s28, 5
    %p331 = por %p329, %p330
    %p332 = scmp.ne.s32.totalorder %s323, %s324
    %p333 = scmp.eq.s32.totalorder %s28, 0
    %p334 = por %p332, %p333
    %p335 = scmp.ne.s32.totalorder %s323, %s324
    %p336 = scmp.eq.s32.totalorder %s29, 5
    %p337 = por %p335, %p336
    %p339 = scmp.ne.s32.totalorder %s324, %s338
    %p340 = scmp.eq.s32.totalorder %s29, 0
    %p341 = por %p339, %p340
    %s343 = sadd.s32 %s342, 1
    %p346 = scmp.eq.s32.totalorder %s23, 5
    %p347 = scmp.ne.s32.totalorder %s342, %s344
    %p348 = scmp.eq.s32.totalorder %s23, 0
    %p349 = por %p347, %p348
    %p350 = scmp.ne.s32.totalorder %s342, %s344
    %p351 = scmp.eq.s32.totalorder %s28, 5
    %p352 = por %p350, %p351
    %p353 = scmp.ne.s32.totalorder %s344, %s345
    %p354 = scmp.eq.s32.totalorder %s28, 0
    %p355 = por %p353, %p354
    %p356 = scmp.ne.s32.totalorder %s344, %s345
    %p357 = scmp.eq.s32.totalorder %s29, 5
    %p358 = por %p356, %p357
    %p360 = scmp.ne.s32.totalorder %s345, %s359
    %p361 = scmp.eq.s32.totalorder %s29, 0
    %p362 = por %p360, %p361
    %s364 = sadd.s32 %s363, 1
    %p367 = scmp.eq.s32.totalorder %s23, 5
    %p368 = scmp.ne.s32.totalorder %s363, %s365
    %p369 = scmp.eq.s32.totalorder %s23, 0
    %p370 = por %p368, %p369
    %p371 = scmp.ne.s32.totalorder %s363, %s365
    %p372 = scmp.eq.s32.totalorder %s28, 5
    %p373 = por %p371, %p372
    %p374 = scmp.ne.s32.totalorder %s365, %s366
    %p375 = scmp.eq.s32.totalorder %s28, 0
    %p376 = por %p374, %p375
    %p377 = scmp.ne.s32.totalorder %s365, %s366
    %p378 = scmp.eq.s32.totalorder %s29, 5
    %p379 = por %p377, %p378
    %p381 = scmp.ne.s32.totalorder %s366, %s380
    %p382 = scmp.eq.s32.totalorder %s29, 0
    %p383 = por %p381, %p382
    %s385 = sadd.s32 %s384, 1
    %p388 = scmp.eq.s32.totalorder %s23, 5
    %p389 = scmp.ne.s32.totalorder %s384, %s386
    %p390 = scmp.eq.s32.totalorder %s23, 0
    %p391 = por %p389, %p390
    %p392 = scmp.ne.s32.totalorder %s384, %s386
    %p393 = scmp.eq.s32.totalorder %s28, 5
    %p394 = por %p392, %p393
    %p395 = scmp.ne.s32.totalorder %s386, %s387
    %p396 = scmp.eq.s32.totalorder %s28, 0
    %p397 = por %p395, %p396
    %p398 = scmp.ne.s32.totalorder %s386, %s387
    %p399 = scmp.eq.s32.totalorder %s29, 5
    %p400 = por %p398, %p399
    %p402 = scmp.ne.s32.totalorder %s387, %s401
    %p403 = scmp.eq.s32.totalorder %s29, 0
    %p404 = por %p402, %p403
    %s405 = ssub.s32 %s30, %s42
    %p406 = scmp.eq.s32.totalorder %s405, 0
    %s408 = sadd.s32 %s407, 1
    %s409 = scalar_select %p406, %s407, %s408
    %p412 = pneg %p406
    %p413 = scmp.eq.s32.totalorder %s23, 5
    %p414 = por %p412, %p413
    %p415 = scmp.ne.s32.totalorder %s407, %s410
    %p416 = scmp.eq.s32.totalorder %s23, 0
    %p417 = por %p415, %p416
    %p418 = scmp.ne.s32.totalorder %s407, %s410
    %p419 = scmp.eq.s32.totalorder %s28, 5
    %p420 = por %p418, %p419
    %p421 = scmp.ne.s32.totalorder %s410, %s411
    %p422 = scmp.eq.s32.totalorder %s28, 0
    %p423 = por %p421, %p422
    %p424 = scmp.ne.s32.totalorder %s410, %s411
    %p425 = scmp.eq.s32.totalorder %s29, 5
    %p426 = por %p424, %p425
    %p428 = scmp.ne.s32.totalorder %s411, %s427
    %p429 = scmp.eq.s32.totalorder %s29, 0
    %p430 = por %p428, %p429
    %p431 = scmp.le.s32.totalorder 1, %s23
    %p432 = scmp.lt.s32.totalorder %s23, 7
    %p433 = pnand %p431, %p432
    %p434 = pneg %p433
    // Predicated region
    $region9: #{decoder_wav_forward.1} parent=5 // pred_check
      _
    $region10: #{decoder_wav_forward.1} parent=5 // pred_check_branch
      %436 = sbr.rel (%p433) target = $region12
    $region11: #{decoder_wav_forward.1} parent=5 // pred_region
      %s437 = ssub.s32 %s23, 1
      // Predicated region
      $region13: #{decoder_wav_forward.1} parent=11 // pred_check
        %p438 = pneg %p82
      $region14: #{decoder_wav_forward.1} parent=11 // pred_check_branch
        %440 = sbr.rel (%p438) target = $region16
      $region15: #{decoder_wav_forward.1} parent=11 // pred_region
        _
      $region16: #{decoder_wav_forward.1} parent=11 // pred_fallthru
        _
      // Predicated region
      $region17: #{decoder_wav_forward.1} parent=11 // pred_check
        %p441 = pneg %p103
      $region18: #{decoder_wav_forward.1} parent=11 // pred_check_branch
        %443 = sbr.rel (%p441) target = $region20
      $region19: #{decoder_wav_forward.1} parent=11 // pred_region
        _
      $region20: #{decoder_wav_forward.1} parent=11 // pred_fallthru
        _
      // Predicated region
      $region21: #{decoder_wav_forward.1} parent=11 // pred_check
        %p444 = pneg %p124
      $region22: #{decoder_wav_forward.1} parent=11 // pred_check_branch
        %446 = sbr.rel (%p444) target = $region24
      $region23: #{decoder_wav_forward.1} parent=11 // pred_region
        _
      $region24: #{decoder_wav_forward.1} parent=11 // pred_fallthru
        _
      // Predicated region
      $region25: #{decoder_wav_forward.1} parent=11 // pred_check
        %p447 = pneg %p145
      $region26: #{decoder_wav_forward.1} parent=11 // pred_check_branch
        %449 = sbr.rel (%p447) target = $region28
      $region27: #{decoder_wav_forward.1} parent=11 // pred_region
        _
      $region28: #{decoder_wav_forward.1} parent=11 // pred_fallthru
        _
      // Predicated region
      $region29: #{decoder_wav_forward.1} parent=11 // pred_check
        %p450 = pneg %p166
      $region30: #{decoder_wav_forward.1} parent=11 // pred_check_branch
        %452 = sbr.rel (%p450) target = $region32
      $region31: #{decoder_wav_forward.1} parent=11 // pred_region
        _
      $region32: #{decoder_wav_forward.1} parent=11 // pred_fallthru
        _
      // Predicated region
      $region33: #{decoder_wav_forward.1} parent=11 // pred_check
        %p453 = pneg %p187
      $region34: #{decoder_wav_forward.1} parent=11 // pred_check_branch
        %455 = sbr.rel (%p453) target = $region36
      $region35: #{decoder_wav_forward.1} parent=11 // pred_region
        _
      $region36: #{decoder_wav_forward.1} parent=11 // pred_fallthru
        _
      // Predicated region
      $region37: #{decoder_wav_forward.1} parent=11 // pred_check
        %p456 = pneg %p208
      $region38: #{decoder_wav_forward.1} parent=11 // pred_check_branch
        %458 = sbr.rel (%p456) target = $region40
      $region39: #{decoder_wav_forward.1} parent=11 // pred_region
        _
      $region40: #{decoder_wav_forward.1} parent=11 // pred_fallthru
        _
      // Predicated region
      $region41: #{decoder_wav_forward.1} parent=11 // pred_check
        %p459 = pneg %p229
      $region42: #{decoder_wav_forward.1} parent=11 // pred_check_branch
        %461 = sbr.rel (%p459) target = $region44
      $region43: #{decoder_wav_forward.1} parent=11 // pred_region
        _
      $region44: #{decoder_wav_forward.1} parent=11 // pred_fallthru
        _
      // Predicated region
      $region45: #{decoder_wav_forward.1} parent=11 // pred_check
        %p462 = pneg %p250
      $region46: #{decoder_wav_forward.1} parent=11 // pred_check_branch
        %464 = sbr.rel (%p462) target = $region48
      $region47: #{decoder_wav_forward.1} parent=11 // pred_region
        _
      $region48: #{decoder_wav_forward.1} parent=11 // pred_fallthru
        _
      // Predicated region
      $region49: #{decoder_wav_forward.1} parent=11 // pred_check
        %p465 = pneg %p271
      $region50: #{decoder_wav_forward.1} parent=11 // pred_check_branch
        %467 = sbr.rel (%p465) target = $region52
      $region51: #{decoder_wav_forward.1} parent=11 // pred_region
        _
      $region52: #{decoder_wav_forward.1} parent=11 // pred_fallthru
        _
      // Predicated region
      $region53: #{decoder_wav_forward.1} parent=11 // pred_check
        %p468 = pneg %p292
      $region54: #{decoder_wav_forward.1} parent=11 // pred_check_branch
        %470 = sbr.rel (%p468) target = $region56
      $region55: #{decoder_wav_forward.1} parent=11 // pred_region
        _
      $region56: #{decoder_wav_forward.1} parent=11 // pred_fallthru
        _
      // Predicated region
      $region57: #{decoder_wav_forward.1} parent=11 // pred_check
        %p471 = pneg %p313
      $region58: #{decoder_wav_forward.1} parent=11 // pred_check_branch
        %473 = sbr.rel (%p471) target = $region60
      $region59: #{decoder_wav_forward.1} parent=11 // pred_region
        _
      $region60: #{decoder_wav_forward.1} parent=11 // pred_fallthru
        _
      // Predicated region
      $region61: #{decoder_wav_forward.1} parent=11 // pred_check
        %p474 = pneg %p334
      $region62: #{decoder_wav_forward.1} parent=11 // pred_check_branch
        %476 = sbr.rel (%p474) target = $region64
      $region63: #{decoder_wav_forward.1} parent=11 // pred_region
        _
      $region64: #{decoder_wav_forward.1} parent=11 // pred_fallthru
        _
      // Predicated region
      $region65: #{decoder_wav_forward.1} parent=11 // pred_check
        %p477 = pneg %p355
      $region66: #{decoder_wav_forward.1} parent=11 // pred_check_branch
        %479 = sbr.rel (%p477) target = $region68
      $region67: #{decoder_wav_forward.1} parent=11 // pred_region
        _
      $region68: #{decoder_wav_forward.1} parent=11 // pred_fallthru
        _
      // Predicated region
      $region69: #{decoder_wav_forward.1} parent=11 // pred_check
        %p480 = pneg %p376
      $region70: #{decoder_wav_forward.1} parent=11 // pred_check_branch
        %482 = sbr.rel (%p480) target = $region72
      $region71: #{decoder_wav_forward.1} parent=11 // pred_region
        _
      $region72: #{decoder_wav_forward.1} parent=11 // pred_fallthru
        _
      // Predicated region
      $region73: #{decoder_wav_forward.1} parent=11 // pred_check
        %p483 = pneg %p397
      $region74: #{decoder_wav_forward.1} parent=11 // pred_check_branch
        %485 = sbr.rel (%p483) target = $region76
      $region75: #{decoder_wav_forward.1} parent=11 // pred_region
        _
      $region76: #{decoder_wav_forward.1} parent=11 // pred_fallthru
        _
    $region12: #{decoder_wav_forward.1} parent=5 // pred_fallthru
      _
    %p486 = scmp.lt.s32.totalorder %s23, 6
    // Predicated region
    $region77: #{decoder_wav_forward.1} parent=5 // pred_check
      %p487 = pneg %p486
    $region78: #{decoder_wav_forward.1} parent=5 // pred_check_branch
      %489 = sbr.rel (%p487) target = $region80
    $region79: #{decoder_wav_forward.1} parent=5 // pred_region
      // Predicated region
      $region81: #{decoder_wav_forward.1} parent=79 // pred_check
        %p490 = pneg %p55
      $region82: #{decoder_wav_forward.1} parent=79 // pred_check_branch
        %492 = sbr.rel (%p490) target = $region84
      $region83: #{decoder_wav_forward.1} parent=79 // pred_region
        %p493 = scmp.lt.s32.totalorder %s30, 1
        %s494 = scalar_select %p493, %s30, 1
        %s495 = smul.addr %s494, 4
        %s496 = scalar_lea.vmem %s0, %s495
      $region84: #{decoder_wav_forward.1} parent=79 // pred_fallthru
        _
    $region80: #{decoder_wav_forward.1} parent=5 // pred_fallthru
      _
    %p497 = scmp.le.s32.totalorder 1, %s23
    %p498 = scmp.lt.s32.totalorder %s23, 7
    %p499 = pnand %p497, %p498
    %p500 = pneg %p499
    // Predicated region
    $region85: #{decoder_wav_forward.1} parent=5 // pred_check
      _
    $region86: #{decoder_wav_forward.1} parent=5 // pred_check_branch
      %502 = sbr.rel (%p499) target = $region88
    $region87: #{decoder_wav_forward.1} parent=5 // pred_region
      %s503 = ssub.s32 %s23, 1
      %p504 = scmp.lt.s32.totalorder %s32, 1
      %s505 = scalar_select %p504, %s32, 1
      %s506 = smul.addr %s505, 4
      %s507 = scalar_lea.vmem %s0, %s506
      %p508 = pneg %p61
      %p509 = pneg %p58
      %p510 = pneg %p82
      %p511 = pneg %p79
      %p512 = pneg %p103
      %p513 = pneg %p100
      %p514 = pneg %p124
      %p515 = pneg %p121
      %p516 = pneg %p145
      %p517 = pneg %p142
      %p518 = pneg %p166
      %p519 = pneg %p163
      %p520 = pneg %p187
      %p521 = pneg %p184
      %p522 = pneg %p208
      %p523 = pneg %p205
      %p524 = pneg %p229
      %p525 = pneg %p226
      %p526 = pneg %p250
      %p527 = pneg %p247
      %p528 = pneg %p271
      %p529 = pneg %p268
      %p530 = pneg %p292
      %p531 = pneg %p289
      %p532 = pneg %p313
      %p533 = pneg %p310
      %p534 = pneg %p334
      %p535 = pneg %p331
      %p536 = pneg %p355
      %p537 = pneg %p352
      %p538 = pneg %p376
      %p539 = pneg %p373
      %p540 = pneg %p397
      %p541 = pneg %p394
      %p542 = pneg %p423
      %p543 = pneg %p420
      %p544 = scmp.lt.s32.totalorder %s32, 1
      %s545 = scalar_select %p544, %s32, 1
      %s546 = smul.addr %s545, 8
      %s547 = scalar_lea.vmem %s17, %s546
      %p548 = scmp.lt.s32.totalorder %s32, 1
      %s549 = scalar_select %p548, %s32, 1
      %s550 = smul.addr %s549, 4
      %s551 = scalar_lea.vmem %s0, %s550
      %p552 = scmp.lt.s32.totalorder %s32, 1
      %s553 = scalar_select %p552, %s32, 1
      %s554 = smul.addr %s553, 8
      %s555 = scalar_lea.vmem %s17, %s554
      %s556 = smul.u32 %s33, 128
      %p557 = scmp.eq.s32.totalorder %s33, 0
      // Predicated region
      $region89: #{decoder_wav_forward.1} parent=87 // pred_check
        %p558 = pneg %p557
      $region90: #{decoder_wav_forward.1} parent=87 // pred_check_branch
        %560 = sbr.rel (%p558) target = $region92
      $region91: #{decoder_wav_forward.1} parent=87 // pred_region
        %vm561 = vcmask 7168
        %562 = vst.msk [vmem:[#allocation2] sm:$0xff] %vm561, 0.0
        %563 = vst.msk [vmem:[#allocation2 + $0x8] sm:$0xff] %vm561, 0.0
        %564 = vst.msk [vmem:[#allocation2 + $0x10] sm:$0xff] %vm561, 0.0
        %565 = vst.msk [vmem:[#allocation2 + $0x18] sm:$0xff] %vm561, 0.0
      $region92: #{decoder_wav_forward.1} parent=87 // pred_fallthru
        _
      %s566 = sshra.s32 %s556, 7
      %s567 = sand.u32 %s556, 127
      %s568 = scalar_lea.vmem %s551, %s566
      %v569 = vld [vmem:[%s568] sm:$0x3]
      %v570 = vlaneseq
      %v571 = vand.u32 %v570, 127
      %v572 = vadd.s32 %v571, 128
      %s573 = ssub.s32 %s556, 7
      %v574 = vstv %s573
      %v575 = vadd.s32 %v571, %v574
      %v576 = vadd.s32 %v572, %v574
      %vm577 = vcmp.ge.s32.totalorder %v575, 0
      %vm578 = vcmp.ge.s32.totalorder %v576, 0
      %vm579 = vcmp.lt.s32.totalorder %v575, 300
      %vm580 = vcmp.lt.s32.totalorder %v576, 300
      %vm581 = vmand %vm577, %vm579
      %vm582 = vmand %vm578, %vm580
      %v583 = vld [vmem:[%s1] sm:$0xff]
      %v584 = vld [vmem:[%s1 + $0x8] sm:$0xff]
      %v585 = vld [vmem:[%s1 + $0x10] sm:$0xff]
      %v586 = vld [vmem:[%s1 + $0x18] sm:$0xff]
      %v587 = vld [vmem:[%s2] sm:$0xff]
      %v588 = vld [vmem:[%s2 + $0x8] sm:$0xff]
      %v589 = vld [vmem:[%s2 + $0x10] sm:$0xff]
      %v590 = vld [vmem:[%s2 + $0x18] sm:$0xff]
      %v592 = vlaneseq
      %v593 = vshrl.u32 %v592, 7
      %v594 = vsub.s32 0, %v593
      %v595 = vrot.slane %v569, %v594
      %v596 = vlaneseq
      %v597 = vshrl.u32 %v596, 7
      %v598 = vsub.s32 1, %v597
      %v599 = vrot.slane %v569, %v598
      %602 = vrot.lane.b32.xlu0 %v595, 1
      %v603 = vpop.permute.xlu0 %602
      %604 = vrot.lane.b32.xlu0 %v599, 1
      %v605 = vpop.permute.xlu0 %604
      %vm606 = vcmp.lt.s32.totalorder %v571, 1
      %v607 = vsel %vm606, %v603, %v605
      %v608 = vsel %vm606, %v605, %v603
      %609 = vrot.lane.b32.xlu0 %v595, 127
      %v610 = vpop.permute.xlu0 %609
      %611 = vrot.lane.b32.xlu0 %v599, 127
      %v612 = vpop.permute.xlu0 %611
      %vm613 = vcmp.lt.s32.totalorder %v571, 127
      %v614 = vsel %vm613, %v610, %v612
      %v615 = vsel %vm613, %v612, %v610
      %617 = vset.pattern.permute.xlu0 0
      %618 = vperm.xlu0 %617, %v583
      %v619 = vpop.permute.xlu0 %618
      %622 = vset.pattern.permute.xlu0 0
      %623 = vperm.xlu0 %622, %v584
      %v624 = vpop.permute.xlu0 %623
      %627 = vset.pattern.permute.xlu0 0
      %628 = vperm.xlu0 %627, %v585
      %v629 = vpop.permute.xlu0 %628
      %632 = vset.pattern.permute.xlu0 0
      %633 = vperm.xlu0 %632, %v586
      %v634 = vpop.permute.xlu0 %633
      %v636 = vlaneseq
      %v637 = vshrl.u32 %v636, 7
      %v638 = vsub.s32 0, %v637
      %v639 = vrot.slane %v608, %v638
      %v640 = vlaneseq
      %v641 = vshrl.u32 %v640, 7
      %v642 = vsub.s32 0, %v641
      %v643 = vrot.slane %v607, %v642
      %v644 = vmul.f32 %v619, %v639
      %v645 = vmul.f32 %v619, %v643
      %v646 = vmul.f32 %v624, %v639
      %v647 = vmul.f32 %v624, %v643
      %v648 = vmul.f32 %v629, %v639
      %v649 = vmul.f32 %v629, %v643
      %v650 = vmul.f32 %v634, %v639
      %v651 = vmul.f32 %v634, %v643
      %652 = vset.pattern.permute.xlu0 1
      %653 = vperm.xlu0 %652, %v583
      %v654 = vpop.permute.xlu0 %653
      %656 = vset.pattern.permute.xlu0 1
      %657 = vperm.xlu0 %656, %v584
      %v658 = vpop.permute.xlu0 %657
      %660 = vset.pattern.permute.xlu0 1
      %661 = vperm.xlu0 %660, %v585
      %v662 = vpop.permute.xlu0 %661
      %664 = vset.pattern.permute.xlu0 1
      %665 = vperm.xlu0 %664, %v586
      %v666 = vpop.permute.xlu0 %665
      %v668 = vmul.f32 %v654, %v595
      %v669 = vmul.f32 %v654, %v599
      %v670 = vmul.f32 %v658, %v595
      %v671 = vmul.f32 %v658, %v599
      %v672 = vmul.f32 %v662, %v595
      %v673 = vmul.f32 %v662, %v599
      %v674 = vmul.f32 %v666, %v595
      %v675 = vmul.f32 %v666, %v599
      %v676 = vadd.f32 %v644, %v668
      %v677 = vadd.f32 %v645, %v669
      %v678 = vadd.f32 %v646, %v670
      %v679 = vadd.f32 %v647, %v671
      %v680 = vadd.f32 %v648, %v672
      %v681 = vadd.f32 %v649, %v673
      %v682 = vadd.f32 %v650, %v674
      %v683 = vadd.f32 %v651, %v675
      %684 = vset.pattern.permute.xlu0 2
      %685 = vperm.xlu0 %684, %v583
      %v686 = vpop.permute.xlu0 %685
      %688 = vset.pattern.permute.xlu0 2
      %689 = vperm.xlu0 %688, %v584
      %v690 = vpop.permute.xlu0 %689
      %692 = vset.pattern.permute.xlu0 2
      %693 = vperm.xlu0 %692, %v585
      %v694 = vpop.permute.xlu0 %693
      %696 = vset.pattern.permute.xlu0 2
      %697 = vperm.xlu0 %696, %v586
      %v698 = vpop.permute.xlu0 %697
      %v700 = vlaneseq
      %v701 = vshrl.u32 %v700, 7
      %v702 = vsub.s32 0, %v701
      %v703 = vrot.slane %v614, %v702
      %v704 = vlaneseq
      %v705 = vshrl.u32 %v704, 7
      %v706 = vsub.s32 0, %v705
      %v707 = vrot.slane %v615, %v706
      %v708 = vmul.f32 %v686, %v703
      %v709 = vmul.f32 %v686, %v707
      %v710 = vmul.f32 %v690, %v703
      %v711 = vmul.f32 %v690, %v707
      %v712 = vmul.f32 %v694, %v703
      %v713 = vmul.f32 %v694, %v707
      %v714 = vmul.f32 %v698, %v703
      %v715 = vmul.f32 %v698, %v707
      %v716 = vadd.f32 %v676, %v708
      %v717 = vadd.f32 %v677, %v709
      %v718 = vadd.f32 %v678, %v710
      %v719 = vadd.f32 %v679, %v711
      %v720 = vadd.f32 %v680, %v712
      %v721 = vadd.f32 %v681, %v713
      %v722 = vadd.f32 %v682, %v714
      %v723 = vadd.f32 %v683, %v715
      %725 = vset.pattern.permute.xlu0 0
      %726 = vperm.xlu0 %725, %v587
      %v727 = vpop.permute.xlu0 %726
      %730 = vset.pattern.permute.xlu0 0
      %731 = vperm.xlu0 %730, %v588
      %v732 = vpop.permute.xlu0 %731
      %735 = vset.pattern.permute.xlu0 0
      %736 = vperm.xlu0 %735, %v589
      %v737 = vpop.permute.xlu0 %736
      %740 = vset.pattern.permute.xlu0 0
      %741 = vperm.xlu0 %740, %v590
      %v742 = vpop.permute.xlu0 %741
      %v744 = vadd.f32 %v716, %v727
      %v745 = vadd.f32 %v717, %v727
      %v746 = vadd.f32 %v718, %v732
      %v747 = vadd.f32 %v719, %v732
      %v748 = vadd.f32 %v720, %v737
      %v749 = vadd.f32 %v721, %v737
      %v750 = vadd.f32 %v722, %v742
      %v751 = vadd.f32 %v723, %v742
      %vm752 = vcmp.ge.f32.partialorder %v744, 0.0
      %vm753 = vcmp.ge.f32.partialorder %v745, 0.0
      %vm754 = vcmp.ge.f32.partialorder %v746, 0.0
      %vm755 = vcmp.ge.f32.partialorder %v747, 0.0
      %vm756 = vcmp.ge.f32.partialorder %v748, 0.0
      %vm757 = vcmp.ge.f32.partialorder %v749, 0.0
      %vm758 = vcmp.ge.f32.partialorder %v750, 0.0
      %vm759 = vcmp.ge.f32.partialorder %v751, 0.0
      %v760 = vmul.f32 %v744, 0.01
      %v761 = vmul.f32 %v745, 0.01
      %v762 = vmul.f32 %v746, 0.01
      %v763 = vmul.f32 %v747, 0.01
      %v764 = vmul.f32 %v748, 0.01
      %v765 = vmul.f32 %v749, 0.01
      %v766 = vmul.f32 %v750, 0.01
      %v767 = vmul.f32 %v751, 0.01
      %v768 = vsel %vm752, %v744, %v760
      %v769 = vsel %vm753, %v745, %v761
      %v770 = vsel %vm754, %v746, %v762
      %v771 = vsel %vm755, %v747, %v763
      %v772 = vsel %vm756, %v748, %v764
      %v773 = vsel %vm757, %v749, %v765
      %v774 = vsel %vm758, %v750, %v766
      %v775 = vsel %vm759, %v751, %v767
      %v776 = vsel %vm581, 1, 0
      %v777 = vsel %vm582, 1, 0
      %vm778 = vcmp.eq.s32.totalorder %v776, 1
      %vm779 = vcmp.eq.s32.totalorder %v777, 1
      %v780 = vsel %vm778, %v768, 0.0
      %v781 = vsel %vm779, %v769, 0.0
      %v782 = vsel %vm778, %v770, 0.0
      %v783 = vsel %vm779, %v771, 0.0
      %v784 = vsel %vm778, %v772, 0.0
      %v785 = vsel %vm779, %v773, 0.0
      %v786 = vsel %vm778, %v774, 0.0
      %v787 = vsel %vm779, %v775, 0.0
      %v788 = vld [vmem:[%s3] sm:$0xff]
      %v789 = vld [vmem:[%s3 + $0x8] sm:$0xff]
      %v790 = vld [vmem:[%s3 + $0x10] sm:$0xff]
      %v791 = vld [vmem:[%s3 + $0x18] sm:$0xff]
      %v792 = vld [vmem:[%s4] sm:$0xff]
      %v793 = vld [vmem:[%s4 + $0x8] sm:$0xff]
      %v794 = vld [vmem:[%s4 + $0x10] sm:$0xff]
      %v795 = vld [vmem:[%s4 + $0x18] sm:$0xff]
      %796 = vrot.lane.b32.xlu0 %v780, 1
      %v797 = vpop.permute.xlu0 %796
      %798 = vrot.lane.b32.xlu0 %v782, 1
      %v799 = vpop.permute.xlu0 %798
      %800 = vrot.lane.b32.xlu0 %v784, 1
      %v801 = vpop.permute.xlu0 %800
      %802 = vrot.lane.b32.xlu0 %v786, 1
      %v803 = vpop.permute.xlu0 %802
      %804 = vrot.lane.b32.xlu0 %v781, 1
      %v805 = vpop.permute.xlu0 %804
      %806 = vrot.lane.b32.xlu0 %v783, 1
      %v807 = vpop.permute.xlu0 %806
      %808 = vrot.lane.b32.xlu0 %v785, 1
      %v809 = vpop.permute.xlu0 %808
      %810 = vrot.lane.b32.xlu0 %v787, 1
      %v811 = vpop.permute.xlu0 %810
      %v812 = vsel %vm606, %v797, %v805
      %v813 = vsel %vm606, %v799, %v807
      %v814 = vsel %vm606, %v801, %v809
      %v815 = vsel %vm606, %v803, %v811
      %v816 = vsel %vm606, %v805, %v797
      %v817 = vsel %vm606, %v807, %v799
      %v818 = vsel %vm606, %v809, %v801
      %v819 = vsel %vm606, %v811, %v803
      %820 = vrot.lane.b32.xlu0 %v780, 127
      %v821 = vpop.permute.xlu0 %820
      %822 = vrot.lane.b32.xlu0 %v782, 127
      %v823 = vpop.permute.xlu0 %822
      %824 = vrot.lane.b32.xlu0 %v784, 127
      %v825 = vpop.permute.xlu0 %824
      %826 = vrot.lane.b32.xlu0 %v786, 127
      %v827 = vpop.permute.xlu0 %826
      %828 = vrot.lane.b32.xlu0 %v781, 127
      %v829 = vpop.permute.xlu0 %828
      %830 = vrot.lane.b32.xlu0 %v783, 127
      %v831 = vpop.permute.xlu0 %830
      %832 = vrot.lane.b32.xlu0 %v785, 127
      %v833 = vpop.permute.xlu0 %832
      %834 = vrot.lane.b32.xlu0 %v787, 127
      %v835 = vpop.permute.xlu0 %834
      %v836 = vsel %vm613, %v821, %v829
      %v837 = vsel %vm613, %v823, %v831
      %v838 = vsel %vm613, %v825, %v833
      %v839 = vsel %vm613, %v827, %v835
      %v840 = vsel %vm613, %v829, %v821
      %v841 = vsel %vm613, %v831, %v823
      %v842 = vsel %vm613, %v833, %v825
      %v843 = vsel %vm613, %v835, %v827
      %845 = vset.pattern.permute.xlu0 0
      %846 = vperm.xlu0 %845, %v792
      %v847 = vpop.permute.xlu0 %846
      %850 = vset.pattern.permute.xlu0 0
      %851 = vperm.xlu0 %850, %v793
      %v852 = vpop.permute.xlu0 %851
      %855 = vset.pattern.permute.xlu0 0
      %856 = vperm.xlu0 %855, %v794
      %v857 = vpop.permute.xlu0 %856
      %860 = vset.pattern.permute.xlu0 0
      %861 = vperm.xlu0 %860, %v795
      %v862 = vpop.permute.xlu0 %861
      %vm864 = vcmask 785408
      %v866 = vsel %vm864, %v788, 0
      %v869 = vsel %vm864, %v789, 0
      %v872 = vsel %vm864, %v790, 0
      %v875 = vsel %vm864, %v791, 0
      %877 = vmatprep.subr.mxu0 0.0
      %878 = vmatpush1.msra.mxu0 0.0
      %879 = vmatprep.subr.mxu0 0.0
      %880 = vmatpush1.msra.mxu0 0.0
      %881 = vmatprep.subr.mxu0 0.0
      %882 = vmatpush1.msra.mxu0 0.0
      %883 = vmatprep.subr.mxu0 0.0
      %884 = vmatpush1.msra.mxu0 0.0
      %885 = vmatprep.subr.mxu0 %v843
      %886 = vmatpush1.msra.mxu0 %v839
      %887 = vmatprep.subr.mxu0 %v842
      %888 = vmatpush1.msra.mxu0 %v838
      %889 = vmatprep.subr.mxu0 %v841
      %890 = vmatpush1.msra.mxu0 %v837
      %891 = vmatprep.subr.mxu0 %v840
      %892 = vmatpush1.msra.mxu0 %v836
      %893 = vmatprep.subr.mxu0 %v787
      %894 = vmatpush1.msra.mxu0 %v786
      %895 = vmatprep.subr.mxu0 %v785
      %896 = vmatpush1.msra.mxu0 %v784
      %897 = vmatprep.subr.mxu0 %v783
      %898 = vmatpush1.msra.mxu0 %v782
      %899 = vmatprep.subr.mxu0 %v781
      %900 = vmatpush1.msra.mxu0 %v780
      %901 = vmatprep.subr.mxu0 %v815
      %902 = vmatpush1.msra.mxu0 %v819
      %903 = vmatprep.subr.mxu0 %v814
      %904 = vmatpush1.msra.mxu0 %v818
      %905 = vmatprep.subr.mxu0 %v813
      %906 = vmatpush1.msra.mxu0 %v817
      %907 = vmatprep.subr.mxu0 %v812
      %908 = vmatpush1.msra.mxu0 %v816
      %909 = vmatprep.subr.mxu0 0.0
      %910 = vmatpush2.msra.mxu0 0.0
      %911 = vmatprep.subr.mxu0 0.0
      %912 = vmatpush2.msra.mxu0 0.0
      %913 = vmatprep.subr.mxu0 0.0
      %914 = vmatpush2.msra.mxu0 0.0
      %915 = vmatprep.subr.mxu0 0.0
      %916 = vmatpush2.msra.mxu0 0.0
      %917 = vmatprep.subr.mxu0 0.0
      %918 = vmatpush2.msra.mxu0 0.0
      %919 = vmatprep.subr.mxu0 0.0
      %920 = vmatpush2.msra.mxu0 0.0
      %921 = vmatprep.subr.mxu0 0.0
      %922 = vmatpush2.msra.mxu0 0.0
      %923 = vmatprep.subr.mxu0 0.0
      %924 = vmatpush2.msra.mxu0 0.0
      %925 = vmatprep.subr.mxu0 0.0
      %926 = vmatpush2.msra.mxu0 0.0
      %927 = vmatprep.subr.mxu0 0.0
      %928 = vmatpush2.msra.mxu0 0.0
      %929 = vmatprep.subr.mxu0 0.0
      %930 = vmatpush2.msra.mxu0 0.0
      %931 = vmatprep.subr.mxu0 0.0
      %932 = vmatpush2.msra.mxu0 0.0
      %933 = vmatprep.subr.mxu0 0.0
      %934 = vmatpush2.msra.mxu0 0.0
      %935 = vmatprep.subr.mxu0 0.0
      %936 = vmatpush2.msra.mxu0 0.0
      %937 = vmatprep.subr.mxu0 0.0
      %938 = vmatpush2.msra.mxu0 0.0
      %939 = vmatprep.subr.mxu0 0.0
      %940 = vmatpush2.msra.mxu0 0.0
      %941 = vmatprep.mubr.f32.mxu0 0.0
      %942 = vmatmul.mubr.f32.gmra.mxu0 %v866
      %v943 = vpop.f32.mrf.mxu0
      %v944 = vadd.f32 %v847, %v943
      %v945 = vpop.f32.mrf.mxu0
      %v946 = vadd.f32 %v847, %v945
      %947 = vmatprep.mubr.f32.mxu0 0.0
      %948 = vmatmul.mubr.f32.gmra.mxu0 %v869
      %v949 = vpop.f32.mrf.mxu0
      %v950 = vadd.f32 %v852, %v949
      %v951 = vpop.f32.mrf.mxu0
      %v952 = vadd.f32 %v852, %v951
      %953 = vmatprep.mubr.f32.mxu0 0.0
      %954 = vmatmul.mubr.f32.gmra.mxu0 %v872
      %v955 = vpop.f32.mrf.mxu0
      %v956 = vadd.f32 %v857, %v955
      %v957 = vpop.f32.mrf.mxu0
      %v958 = vadd.f32 %v857, %v957
      %959 = vmatprep.mubr.f32.mxu0 0.0
      %960 = vmatmul.mubr.f32.gmra.mxu0 %v875
      %v961 = vpop.f32.mrf.mxu0
      %v962 = vadd.f32 %v862, %v961
      %v963 = vpop.f32.mrf.mxu0
      %v964 = vadd.f32 %v862, %v963
      %965 = vdwg.mxu0
      %vm966 = vcmp.ge.f32.partialorder %v944, 0.0
      %vm967 = vcmp.ge.f32.partialorder %v946, 0.0
      %vm968 = vcmp.ge.f32.partialorder %v950, 0.0
      %vm969 = vcmp.ge.f32.partialorder %v952, 0.0
      %vm970 = vcmp.ge.f32.partialorder %v956, 0.0
      %vm971 = vcmp.ge.f32.partialorder %v958, 0.0
      %vm972 = vcmp.ge.f32.partialorder %v962, 0.0
      %vm973 = vcmp.ge.f32.partialorder %v964, 0.0
      %v974 = vmul.f32 %v944, 0.01
      %v975 = vmul.f32 %v946, 0.01
      %v976 = vmul.f32 %v950, 0.01
      %v977 = vmul.f32 %v952, 0.01
      %v978 = vmul.f32 %v956, 0.01
      %v979 = vmul.f32 %v958, 0.01
      %v980 = vmul.f32 %v962, 0.01
      %v981 = vmul.f32 %v964, 0.01
      %v982 = vsel %vm966, %v944, %v974
      %v983 = vsel %vm967, %v946, %v975
      %v984 = vsel %vm968, %v950, %v976
      %v985 = vsel %vm969, %v952, %v977
      %v986 = vsel %vm970, %v956, %v978
      %v987 = vsel %vm971, %v958, %v979
      %v988 = vsel %vm972, %v962, %v980
      %v989 = vsel %vm973, %v964, %v981
      %v990 = vsel %vm778, %v982, 0.0
      %v991 = vsel %vm779, %v983, 0.0
      %v992 = vsel %vm778, %v984, 0.0
      %v993 = vsel %vm779, %v985, 0.0
      %v994 = vsel %vm778, %v986, 0.0
      %v995 = vsel %vm779, %v987, 0.0
      %v996 = vsel %vm778, %v988, 0.0
      %v997 = vsel %vm779, %v989, 0.0
      %v998 = vld [vmem:[%s5] sm:$0xff]
      %v999 = vld [vmem:[%s5 + $0x8] sm:$0xff]
      %v1000 = vld [vmem:[%s5 + $0x10] sm:$0xff]
      %v1001 = vld [vmem:[%s5 + $0x18] sm:$0xff]
      %v1002 = vld [vmem:[%s6] sm:$0xff]
      %v1003 = vld [vmem:[%s6 + $0x8] sm:$0xff]
      %v1004 = vld [vmem:[%s6 + $0x10] sm:$0xff]
      %v1005 = vld [vmem:[%s6 + $0x18] sm:$0xff]
      %1006 = vrot.lane.b32.xlu0 %v990, 1
      %v1007 = vpop.permute.xlu0 %1006
      %1008 = vrot.lane.b32.xlu0 %v992, 1
      %v1009 = vpop.permute.xlu0 %1008
      %1010 = vrot.lane.b32.xlu0 %v994, 1
      %v1011 = vpop.permute.xlu0 %1010
      %1012 = vrot.lane.b32.xlu0 %v996, 1
      %v1013 = vpop.permute.xlu0 %1012
      %1014 = vrot.lane.b32.xlu0 %v991, 1
      %v1015 = vpop.permute.xlu0 %1014
      %1016 = vrot.lane.b32.xlu0 %v993, 1
      %v1017 = vpop.permute.xlu0 %1016
      %1018 = vrot.lane.b32.xlu0 %v995, 1
      %v1019 = vpop.permute.xlu0 %1018
      %1020 = vrot.lane.b32.xlu0 %v997, 1
      %v1021 = vpop.permute.xlu0 %1020
      %v1022 = vsel %vm606, %v1007, %v1015
      %v1023 = vsel %vm606, %v1009, %v1017
      %v1024 = vsel %vm606, %v1011, %v1019
      %v1025 = vsel %vm606, %v1013, %v1021
      %v1026 = vsel %vm606, %v1015, %v1007
      %v1027 = vsel %vm606, %v1017, %v1009
      %v1028 = vsel %vm606, %v1019, %v1011
      %v1029 = vsel %vm606, %v1021, %v1013
      %1030 = vrot.lane.b32.xlu0 %v990, 127
      %v1031 = vpop.permute.xlu0 %1030
      %1032 = vrot.lane.b32.xlu0 %v992, 127
      %v1033 = vpop.permute.xlu0 %1032
      %1034 = vrot.lane.b32.xlu0 %v994, 127
      %v1035 = vpop.permute.xlu0 %1034
      %1036 = vrot.lane.b32.xlu0 %v996, 127
      %v1037 = vpop.permute.xlu0 %1036
      %1038 = vrot.lane.b32.xlu0 %v991, 127
      %v1039 = vpop.permute.xlu0 %1038
      %1040 = vrot.lane.b32.xlu0 %v993, 127
      %v1041 = vpop.permute.xlu0 %1040
      %1042 = vrot.lane.b32.xlu0 %v995, 127
      %v1043 = vpop.permute.xlu0 %1042
      %1044 = vrot.lane.b32.xlu0 %v997, 127
      %v1045 = vpop.permute.xlu0 %1044
      %v1046 = vsel %vm613, %v1031, %v1039
      %v1047 = vsel %vm613, %v1033, %v1041
      %v1048 = vsel %vm613, %v1035, %v1043
      %v1049 = vsel %vm613, %v1037, %v1045
      %v1050 = vsel %vm613, %v1039, %v1031
      %v1051 = vsel %vm613, %v1041, %v1033
      %v1052 = vsel %vm613, %v1043, %v1035
      %v1053 = vsel %vm613, %v1045, %v1037
      %1055 = vset.pattern.permute.xlu0 0
      %1056 = vperm.xlu0 %1055, %v1002
      %v1057 = vpop.permute.xlu0 %1056
      %1060 = vset.pattern.permute.xlu0 0
      %1061 = vperm.xlu0 %1060, %v1003
      %v1062 = vpop.permute.xlu0 %1061
      %1065 = vset.pattern.permute.xlu0 0
      %1066 = vperm.xlu0 %1065, %v1004
      %v1067 = vpop.permute.xlu0 %1066
      %1070 = vset.pattern.permute.xlu0 0
      %1071 = vperm.xlu0 %1070, %v1005
      %v1072 = vpop.permute.xlu0 %1071
      %v1075 = vsel %vm864, %v998, 0
      %v1078 = vsel %vm864, %v999, 0
      %v1081 = vsel %vm864, %v1000, 0
      %v1084 = vsel %vm864, %v1001, 0
      %1086 = vmatprep.subr.mxu0 0.0
      %1087 = vmatpush1.msra.mxu0 0.0
      %1088 = vmatprep.subr.mxu0 0.0
      %1089 = vmatpush1.msra.mxu0 0.0
      %1090 = vmatprep.subr.mxu0 0.0
      %1091 = vmatpush1.msra.mxu0 0.0
      %1092 = vmatprep.subr.mxu0 0.0
      %1093 = vmatpush1.msra.mxu0 0.0
      %1094 = vmatprep.subr.mxu0 %v1053
      %1095 = vmatpush1.msra.mxu0 %v1049
      %1096 = vmatprep.subr.mxu0 %v1052
      %1097 = vmatpush1.msra.mxu0 %v1048
      %1098 = vmatprep.subr.mxu0 %v1051
      %1099 = vmatpush1.msra.mxu0 %v1047
      %1100 = vmatprep.subr.mxu0 %v1050
      %1101 = vmatpush1.msra.mxu0 %v1046
      %1102 = vmatprep.subr.mxu0 %v997
      %1103 = vmatpush1.msra.mxu0 %v996
      %1104 = vmatprep.subr.mxu0 %v995
      %1105 = vmatpush1.msra.mxu0 %v994
      %1106 = vmatprep.subr.mxu0 %v993
      %1107 = vmatpush1.msra.mxu0 %v992
      %1108 = vmatprep.subr.mxu0 %v991
      %1109 = vmatpush1.msra.mxu0 %v990
      %1110 = vmatprep.subr.mxu0 %v1025
      %1111 = vmatpush1.msra.mxu0 %v1029
      %1112 = vmatprep.subr.mxu0 %v1024
      %1113 = vmatpush1.msra.mxu0 %v1028
      %1114 = vmatprep.subr.mxu0 %v1023
      %1115 = vmatpush1.msra.mxu0 %v1027
      %1116 = vmatprep.subr.mxu0 %v1022
      %1117 = vmatpush1.msra.mxu0 %v1026
      %1118 = vmatprep.subr.mxu0 0.0
      %1119 = vmatpush2.msra.mxu0 0.0
      %1120 = vmatprep.subr.mxu0 0.0
      %1121 = vmatpush2.msra.mxu0 0.0
      %1122 = vmatprep.subr.mxu0 0.0
      %1123 = vmatpush2.msra.mxu0 0.0
      %1124 = vmatprep.subr.mxu0 0.0
      %1125 = vmatpush2.msra.mxu0 0.0
      %1126 = vmatprep.subr.mxu0 0.0
      %1127 = vmatpush2.msra.mxu0 0.0
      %1128 = vmatprep.subr.mxu0 0.0
      %1129 = vmatpush2.msra.mxu0 0.0
      %1130 = vmatprep.subr.mxu0 0.0
      %1131 = vmatpush2.msra.mxu0 0.0
      %1132 = vmatprep.subr.mxu0 0.0
      %1133 = vmatpush2.msra.mxu0 0.0
      %1134 = vmatprep.subr.mxu0 0.0
      %1135 = vmatpush2.msra.mxu0 0.0
      %1136 = vmatprep.subr.mxu0 0.0
      %1137 = vmatpush2.msra.mxu0 0.0
      %1138 = vmatprep.subr.mxu0 0.0
      %1139 = vmatpush2.msra.mxu0 0.0
      %1140 = vmatprep.subr.mxu0 0.0
      %1141 = vmatpush2.msra.mxu0 0.0
      %1142 = vmatprep.subr.mxu0 0.0
      %1143 = vmatpush2.msra.mxu0 0.0
      %1144 = vmatprep.subr.mxu0 0.0
      %1145 = vmatpush2.msra.mxu0 0.0
      %1146 = vmatprep.subr.mxu0 0.0
      %1147 = vmatpush2.msra.mxu0 0.0
      %1148 = vmatprep.subr.mxu0 0.0
      %1149 = vmatpush2.msra.mxu0 0.0
      %1150 = vmatprep.mubr.f32.mxu0 0.0
      %1151 = vmatmul.mubr.f32.gmra.mxu0 %v1075
      %v1152 = vpop.f32.mrf.mxu0
      %v1153 = vadd.f32 %v1057, %v1152
      %v1154 = vpop.f32.mrf.mxu0
      %v1155 = vadd.f32 %v1057, %v1154
      %1156 = vmatprep.mubr.f32.mxu0 0.0
      %1157 = vmatmul.mubr.f32.gmra.mxu0 %v1078
      %v1158 = vpop.f32.mrf.mxu0
      %v1159 = vadd.f32 %v1062, %v1158
      %v1160 = vpop.f32.mrf.mxu0
      %v1161 = vadd.f32 %v1062, %v1160
      %1162 = vmatprep.mubr.f32.mxu0 0.0
      %1163 = vmatmul.mubr.f32.gmra.mxu0 %v1081
      %v1164 = vpop.f32.mrf.mxu0
      %v1165 = vadd.f32 %v1067, %v1164
      %v1166 = vpop.f32.mrf.mxu0
      %v1167 = vadd.f32 %v1067, %v1166
      %1168 = vmatprep.mubr.f32.mxu0 0.0
      %1169 = vmatmul.mubr.f32.gmra.mxu0 %v1084
      %v1170 = vpop.f32.mrf.mxu0
      %v1171 = vadd.f32 %v1072, %v1170
      %v1172 = vpop.f32.mrf.mxu0
      %v1173 = vadd.f32 %v1072, %v1172
      %1174 = vdwg.mxu0
      %vm1175 = vcmp.ge.f32.partialorder %v1153, 0.0
      %vm1176 = vcmp.ge.f32.partialorder %v1155, 0.0
      %vm1177 = vcmp.ge.f32.partialorder %v1159, 0.0
      %vm1178 = vcmp.ge.f32.partialorder %v1161, 0.0
      %vm1179 = vcmp.ge.f32.partialorder %v1165, 0.0
      %vm1180 = vcmp.ge.f32.partialorder %v1167, 0.0
      %vm1181 = vcmp.ge.f32.partialorder %v1171, 0.0
      %vm1182 = vcmp.ge.f32.partialorder %v1173, 0.0
      %v1183 = vmul.f32 %v1153, 0.01
      %v1184 = vmul.f32 %v1155, 0.01
      %v1185 = vmul.f32 %v1159, 0.01
      %v1186 = vmul.f32 %v1161, 0.01
      %v1187 = vmul.f32 %v1165, 0.01
      %v1188 = vmul.f32 %v1167, 0.01
      %v1189 = vmul.f32 %v1171, 0.01
      %v1190 = vmul.f32 %v1173, 0.01
      %v1191 = vsel %vm1175, %v1153, %v1183
      %v1192 = vsel %vm1176, %v1155, %v1184
      %v1193 = vsel %vm1177, %v1159, %v1185
      %v1194 = vsel %vm1178, %v1161, %v1186
      %v1195 = vsel %vm1179, %v1165, %v1187
      %v1196 = vsel %vm1180, %v1167, %v1188
      %v1197 = vsel %vm1181, %v1171, %v1189
      %v1198 = vsel %vm1182, %v1173, %v1190
      %v1199 = vsel %vm778, %v1191, 0.0
      %v1200 = vsel %vm779, %v1192, 0.0
      %v1201 = vsel %vm778, %v1193, 0.0
      %v1202 = vsel %vm779, %v1194, 0.0
      %v1203 = vsel %vm778, %v1195, 0.0
      %v1204 = vsel %vm779, %v1196, 0.0
      %v1205 = vsel %vm778, %v1197, 0.0
      %v1206 = vsel %vm779, %v1198, 0.0
      %v1207 = vld [vmem:[%s7] sm:$0xff]
      %v1208 = vld [vmem:[%s7 + $0x8] sm:$0xff]
      %v1209 = vld [vmem:[%s7 + $0x10] sm:$0xff]
      %v1210 = vld [vmem:[%s7 + $0x18] sm:$0xff]
      %v1211 = vld [vmem:[%s8] sm:$0xff]
      %v1212 = vld [vmem:[%s8 + $0x8] sm:$0xff]
      %v1213 = vld [vmem:[%s8 + $0x10] sm:$0xff]
      %v1214 = vld [vmem:[%s8 + $0x18] sm:$0xff]
      %1215 = vrot.lane.b32.xlu0 %v1199, 1
      %v1216 = vpop.permute.xlu0 %1215
      %1217 = vrot.lane.b32.xlu0 %v1201, 1
      %v1218 = vpop.permute.xlu0 %1217
      %1219 = vrot.lane.b32.xlu0 %v1203, 1
      %v1220 = vpop.permute.xlu0 %1219
      %1221 = vrot.lane.b32.xlu0 %v1205, 1
      %v1222 = vpop.permute.xlu0 %1221
      %1223 = vrot.lane.b32.xlu0 %v1200, 1
      %v1224 = vpop.permute.xlu0 %1223
      %1225 = vrot.lane.b32.xlu0 %v1202, 1
      %v1226 = vpop.permute.xlu0 %1225
      %1227 = vrot.lane.b32.xlu0 %v1204, 1
      %v1228 = vpop.permute.xlu0 %1227
      %1229 = vrot.lane.b32.xlu0 %v1206, 1
      %v1230 = vpop.permute.xlu0 %1229
      %v1231 = vsel %vm606, %v1216, %v1224
      %v1232 = vsel %vm606, %v1218, %v1226
      %v1233 = vsel %vm606, %v1220, %v1228
      %v1234 = vsel %vm606, %v1222, %v1230
      %v1235 = vsel %vm606, %v1224, %v1216
      %v1236 = vsel %vm606, %v1226, %v1218
      %v1237 = vsel %vm606, %v1228, %v1220
      %v1238 = vsel %vm606, %v1230, %v1222
      %1239 = vrot.lane.b32.xlu0 %v1199, 127
      %v1240 = vpop.permute.xlu0 %1239
      %1241 = vrot.lane.b32.xlu0 %v1201, 127
      %v1242 = vpop.permute.xlu0 %1241
      %1243 = vrot.lane.b32.xlu0 %v1203, 127
      %v1244 = vpop.permute.xlu0 %1243
      %1245 = vrot.lane.b32.xlu0 %v1205, 127
      %v1246 = vpop.permute.xlu0 %1245
      %1247 = vrot.lane.b32.xlu0 %v1200, 127
      %v1248 = vpop.permute.xlu0 %1247
      %1249 = vrot.lane.b32.xlu0 %v1202, 127
      %v1250 = vpop.permute.xlu0 %1249
      %1251 = vrot.lane.b32.xlu0 %v1204, 127
      %v1252 = vpop.permute.xlu0 %1251
      %1253 = vrot.lane.b32.xlu0 %v1206, 127
      %v1254 = vpop.permute.xlu0 %1253
      %v1255 = vsel %vm613, %v1240, %v1248
      %v1256 = vsel %vm613, %v1242, %v1250
      %v1257 = vsel %vm613, %v1244, %v1252
      %v1258 = vsel %vm613, %v1246, %v1254
      %v1259 = vsel %vm613, %v1248, %v1240
      %v1260 = vsel %vm613, %v1250, %v1242
      %v1261 = vsel %vm613, %v1252, %v1244
      %v1262 = vsel %vm613, %v1254, %v1246
      %1264 = vset.pattern.permute.xlu0 0
      %1265 = vperm.xlu0 %1264, %v1211
      %v1266 = vpop.permute.xlu0 %1265
      %1269 = vset.pattern.permute.xlu0 0
      %1270 = vperm.xlu0 %1269, %v1212
      %v1271 = vpop.permute.xlu0 %1270
      %1274 = vset.pattern.permute.xlu0 0
      %1275 = vperm.xlu0 %1274, %v1213
      %v1276 = vpop.permute.xlu0 %1275
      %1279 = vset.pattern.permute.xlu0 0
      %1280 = vperm.xlu0 %1279, %v1214
      %v1281 = vpop.permute.xlu0 %1280
      %v1284 = vsel %vm864, %v1207, 0
      %v1287 = vsel %vm864, %v1208, 0
      %v1290 = vsel %vm864, %v1209, 0
      %v1293 = vsel %vm864, %v1210, 0
      %1295 = vmatprep.subr.mxu0 0.0
      %1296 = vmatpush1.msra.mxu0 0.0
      %1297 = vmatprep.subr.mxu0 0.0
      %1298 = vmatpush1.msra.mxu0 0.0
      %1299 = vmatprep.subr.mxu0 0.0
      %1300 = vmatpush1.msra.mxu0 0.0
      %1301 = vmatprep.subr.mxu0 0.0
      %1302 = vmatpush1.msra.mxu0 0.0
      %1303 = vmatprep.subr.mxu0 %v1262
      %1304 = vmatpush1.msra.mxu0 %v1258
      %1305 = vmatprep.subr.mxu0 %v1261
      %1306 = vmatpush1.msra.mxu0 %v1257
      %1307 = vmatprep.subr.mxu0 %v1260
      %1308 = vmatpush1.msra.mxu0 %v1256
      %1309 = vmatprep.subr.mxu0 %v1259
      %1310 = vmatpush1.msra.mxu0 %v1255
      %1311 = vmatprep.subr.mxu0 %v1206
      %1312 = vmatpush1.msra.mxu0 %v1205
      %1313 = vmatprep.subr.mxu0 %v1204
      %1314 = vmatpush1.msra.mxu0 %v1203
      %1315 = vmatprep.subr.mxu0 %v1202
      %1316 = vmatpush1.msra.mxu0 %v1201
      %1317 = vmatprep.subr.mxu0 %v1200
      %1318 = vmatpush1.msra.mxu0 %v1199
      %1319 = vmatprep.subr.mxu0 %v1234
      %1320 = vmatpush1.msra.mxu0 %v1238
      %1321 = vmatprep.subr.mxu0 %v1233
      %1322 = vmatpush1.msra.mxu0 %v1237
      %1323 = vmatprep.subr.mxu0 %v1232
      %1324 = vmatpush1.msra.mxu0 %v1236
      %1325 = vmatprep.subr.mxu0 %v1231
      %1326 = vmatpush1.msra.mxu0 %v1235
      %1327 = vmatprep.subr.mxu0 0.0
      %1328 = vmatpush2.msra.mxu0 0.0
      %1329 = vmatprep.subr.mxu0 0.0
      %1330 = vmatpush2.msra.mxu0 0.0
      %1331 = vmatprep.subr.mxu0 0.0
      %1332 = vmatpush2.msra.mxu0 0.0
      %1333 = vmatprep.subr.mxu0 0.0
      %1334 = vmatpush2.msra.mxu0 0.0
      %1335 = vmatprep.subr.mxu0 0.0
      %1336 = vmatpush2.msra.mxu0 0.0
      %1337 = vmatprep.subr.mxu0 0.0
      %1338 = vmatpush2.msra.mxu0 0.0
      %1339 = vmatprep.subr.mxu0 0.0
      %1340 = vmatpush2.msra.mxu0 0.0
      %1341 = vmatprep.subr.mxu0 0.0
      %1342 = vmatpush2.msra.mxu0 0.0
      %1343 = vmatprep.subr.mxu0 0.0
      %1344 = vmatpush2.msra.mxu0 0.0
      %1345 = vmatprep.subr.mxu0 0.0
      %1346 = vmatpush2.msra.mxu0 0.0
      %1347 = vmatprep.subr.mxu0 0.0
      %1348 = vmatpush2.msra.mxu0 0.0
      %1349 = vmatprep.subr.mxu0 0.0
      %1350 = vmatpush2.msra.mxu0 0.0
      %1351 = vmatprep.subr.mxu0 0.0
      %1352 = vmatpush2.msra.mxu0 0.0
      %1353 = vmatprep.subr.mxu0 0.0
      %1354 = vmatpush2.msra.mxu0 0.0
      %1355 = vmatprep.subr.mxu0 0.0
      %1356 = vmatpush2.msra.mxu0 0.0
      %1357 = vmatprep.subr.mxu0 0.0
      %1358 = vmatpush2.msra.mxu0 0.0
      %1359 = vmatprep.mubr.f32.mxu0 0.0
      %1360 = vmatmul.mubr.f32.gmra.mxu0 %v1284
      %v1361 = vpop.f32.mrf.mxu0
      %v1362 = vadd.f32 %v1266, %v1361
      %v1363 = vpop.f32.mrf.mxu0
      %v1364 = vadd.f32 %v1266, %v1363
      %1365 = vmatprep.mubr.f32.mxu0 0.0
      %1366 = vmatmul.mubr.f32.gmra.mxu0 %v1287
      %v1367 = vpop.f32.mrf.mxu0
      %v1368 = vadd.f32 %v1271, %v1367
      %v1369 = vpop.f32.mrf.mxu0
      %v1370 = vadd.f32 %v1271, %v1369
      %1371 = vmatprep.mubr.f32.mxu0 0.0
      %1372 = vmatmul.mubr.f32.gmra.mxu0 %v1290
      %v1373 = vpop.f32.mrf.mxu0
      %v1374 = vadd.f32 %v1276, %v1373
      %v1375 = vpop.f32.mrf.mxu0
      %v1376 = vadd.f32 %v1276, %v1375
      %1377 = vmatprep.mubr.f32.mxu0 0.0
      %1378 = vmatmul.mubr.f32.gmra.mxu0 %v1293
      %v1379 = vpop.f32.mrf.mxu0
      %v1380 = vadd.f32 %v1281, %v1379
      %v1381 = vpop.f32.mrf.mxu0
      %v1382 = vadd.f32 %v1281, %v1381
      %1383 = vdwg.mxu0
      %vm1384 = vcmp.ge.f32.partialorder %v1362, 0.0
      %vm1385 = vcmp.ge.f32.partialorder %v1364, 0.0
      %vm1386 = vcmp.ge.f32.partialorder %v1368, 0.0
      %vm1387 = vcmp.ge.f32.partialorder %v1370, 0.0
      %vm1388 = vcmp.ge.f32.partialorder %v1374, 0.0
      %vm1389 = vcmp.ge.f32.partialorder %v1376, 0.0
      %vm1390 = vcmp.ge.f32.partialorder %v1380, 0.0
      %vm1391 = vcmp.ge.f32.partialorder %v1382, 0.0
      %v1392 = vmul.f32 %v1362, 0.01
      %v1393 = vmul.f32 %v1364, 0.01
      %v1394 = vmul.f32 %v1368, 0.01
      %v1395 = vmul.f32 %v1370, 0.01
      %v1396 = vmul.f32 %v1374, 0.01
      %v1397 = vmul.f32 %v1376, 0.01
      %v1398 = vmul.f32 %v1380, 0.01
      %v1399 = vmul.f32 %v1382, 0.01
      %v1400 = vsel %vm1384, %v1362, %v1392
      %v1401 = vsel %vm1385, %v1364, %v1393
      %v1402 = vsel %vm1386, %v1368, %v1394
      %v1403 = vsel %vm1387, %v1370, %v1395
      %v1404 = vsel %vm1388, %v1374, %v1396
      %v1405 = vsel %vm1389, %v1376, %v1397
      %v1406 = vsel %vm1390, %v1380, %v1398
      %v1407 = vsel %vm1391, %v1382, %v1399
      %v1408 = vsel %vm778, %v1400, 0.0
      %v1409 = vsel %vm779, %v1401, 0.0
      %v1410 = vsel %vm778, %v1402, 0.0
      %v1411 = vsel %vm779, %v1403, 0.0
      %v1412 = vsel %vm778, %v1404, 0.0
      %v1413 = vsel %vm779, %v1405, 0.0
      %v1414 = vsel %vm778, %v1406, 0.0
      %v1415 = vsel %vm779, %v1407, 0.0
      %v1416 = vld [vmem:[%s9] sm:$0xff]
      %v1417 = vld [vmem:[%s9 + $0x8] sm:$0xff]
      %v1418 = vld [vmem:[%s9 + $0x10] sm:$0xff]
      %v1419 = vld [vmem:[%s9 + $0x18] sm:$0xff]
      %v1420 = vld [vmem:[%s10] sm:$0xff]
      %v1421 = vld [vmem:[%s10 + $0x8] sm:$0xff]
      %v1422 = vld [vmem:[%s10 + $0x10] sm:$0xff]
      %v1423 = vld [vmem:[%s10 + $0x18] sm:$0xff]
      %1424 = vrot.lane.b32.xlu0 %v1408, 1
      %v1425 = vpop.permute.xlu0 %1424
      %1426 = vrot.lane.b32.xlu0 %v1410, 1
      %v1427 = vpop.permute.xlu0 %1426
      %1428 = vrot.lane.b32.xlu0 %v1412, 1
      %v1429 = vpop.permute.xlu0 %1428
      %1430 = vrot.lane.b32.xlu0 %v1414, 1
      %v1431 = vpop.permute.xlu0 %1430
      %1432 = vrot.lane.b32.xlu0 %v1409, 1
      %v1433 = vpop.permute.xlu0 %1432
      %1434 = vrot.lane.b32.xlu0 %v1411, 1
      %v1435 = vpop.permute.xlu0 %1434
      %1436 = vrot.lane.b32.xlu0 %v1413, 1
      %v1437 = vpop.permute.xlu0 %1436
      %1438 = vrot.lane.b32.xlu0 %v1415, 1
      %v1439 = vpop.permute.xlu0 %1438
      %v1440 = vsel %vm606, %v1425, %v1433
      %v1441 = vsel %vm606, %v1427, %v1435
      %v1442 = vsel %vm606, %v1429, %v1437
      %v1443 = vsel %vm606, %v1431, %v1439
      %v1444 = vsel %vm606, %v1433, %v1425
      %v1445 = vsel %vm606, %v1435, %v1427
      %v1446 = vsel %vm606, %v1437, %v1429
      %v1447 = vsel %vm606, %v1439, %v1431
      %1448 = vrot.lane.b32.xlu0 %v1408, 127
      %v1449 = vpop.permute.xlu0 %1448
      %1450 = vrot.lane.b32.xlu0 %v1410, 127
      %v1451 = vpop.permute.xlu0 %1450
      %1452 = vrot.lane.b32.xlu0 %v1412, 127
      %v1453 = vpop.permute.xlu0 %1452
      %1454 = vrot.lane.b32.xlu0 %v1414, 127
      %v1455 = vpop.permute.xlu0 %1454
      %1456 = vrot.lane.b32.xlu0 %v1409, 127
      %v1457 = vpop.permute.xlu0 %1456
      %1458 = vrot.lane.b32.xlu0 %v1411, 127
      %v1459 = vpop.permute.xlu0 %1458
      %1460 = vrot.lane.b32.xlu0 %v1413, 127
      %v1461 = vpop.permute.xlu0 %1460
      %1462 = vrot.lane.b32.xlu0 %v1415, 127
      %v1463 = vpop.permute.xlu0 %1462
      %v1464 = vsel %vm613, %v1449, %v1457
      %v1465 = vsel %vm613, %v1451, %v1459
      %v1466 = vsel %vm613, %v1453, %v1461
      %v1467 = vsel %vm613, %v1455, %v1463
      %v1468 = vsel %vm613, %v1457, %v1449
      %v1469 = vsel %vm613, %v1459, %v1451
      %v1470 = vsel %vm613, %v1461, %v1453
      %v1471 = vsel %vm613, %v1463, %v1455
      %1473 = vset.pattern.permute.xlu0 0
      %1474 = vperm.xlu0 %1473, %v1420
      %v1475 = vpop.permute.xlu0 %1474
      %1478 = vset.pattern.permute.xlu0 0
      %1479 = vperm.xlu0 %1478, %v1421
      %v1480 = vpop.permute.xlu0 %1479
      %1483 = vset.pattern.permute.xlu0 0
      %1484 = vperm.xlu0 %1483, %v1422
      %v1485 = vpop.permute.xlu0 %1484
      %1488 = vset.pattern.permute.xlu0 0
      %1489 = vperm.xlu0 %1488, %v1423
      %v1490 = vpop.permute.xlu0 %1489
      %v1493 = vsel %vm864, %v1416, 0
      %v1496 = vsel %vm864, %v1417, 0
      %v1499 = vsel %vm864, %v1418, 0
      %v1502 = vsel %vm864, %v1419, 0
      %1504 = vmatprep.subr.mxu0 0.0
      %1505 = vmatpush1.msra.mxu0 0.0
      %1506 = vmatprep.subr.mxu0 0.0
      %1507 = vmatpush1.msra.mxu0 0.0
      %1508 = vmatprep.subr.mxu0 0.0
      %1509 = vmatpush1.msra.mxu0 0.0
      %1510 = vmatprep.subr.mxu0 0.0
      %1511 = vmatpush1.msra.mxu0 0.0
      %1512 = vmatprep.subr.mxu0 %v1471
      %1513 = vmatpush1.msra.mxu0 %v1467
      %1514 = vmatprep.subr.mxu0 %v1470
      %1515 = vmatpush1.msra.mxu0 %v1466
      %1516 = vmatprep.subr.mxu0 %v1469
      %1517 = vmatpush1.msra.mxu0 %v1465
      %1518 = vmatprep.subr.mxu0 %v1468
      %1519 = vmatpush1.msra.mxu0 %v1464
      %1520 = vmatprep.subr.mxu0 %v1415
      %1521 = vmatpush1.msra.mxu0 %v1414
      %1522 = vmatprep.subr.mxu0 %v1413
      %1523 = vmatpush1.msra.mxu0 %v1412
      %1524 = vmatprep.subr.mxu0 %v1411
      %1525 = vmatpush1.msra.mxu0 %v1410
      %1526 = vmatprep.subr.mxu0 %v1409
      %1527 = vmatpush1.msra.mxu0 %v1408
      %1528 = vmatprep.subr.mxu0 %v1443
      %1529 = vmatpush1.msra.mxu0 %v1447
      %1530 = vmatprep.subr.mxu0 %v1442
      %1531 = vmatpush1.msra.mxu0 %v1446
      %1532 = vmatprep.subr.mxu0 %v1441
      %1533 = vmatpush1.msra.mxu0 %v1445
      %1534 = vmatprep.subr.mxu0 %v1440
      %1535 = vmatpush1.msra.mxu0 %v1444
      %1536 = vmatprep.subr.mxu0 0.0
      %1537 = vmatpush2.msra.mxu0 0.0
      %1538 = vmatprep.subr.mxu0 0.0
      %1539 = vmatpush2.msra.mxu0 0.0
      %1540 = vmatprep.subr.mxu0 0.0
      %1541 = vmatpush2.msra.mxu0 0.0
      %1542 = vmatprep.subr.mxu0 0.0
      %1543 = vmatpush2.msra.mxu0 0.0
      %1544 = vmatprep.subr.mxu0 0.0
      %1545 = vmatpush2.msra.mxu0 0.0
      %1546 = vmatprep.subr.mxu0 0.0
      %1547 = vmatpush2.msra.mxu0 0.0
      %1548 = vmatprep.subr.mxu0 0.0
      %1549 = vmatpush2.msra.mxu0 0.0
      %1550 = vmatprep.subr.mxu0 0.0
      %1551 = vmatpush2.msra.mxu0 0.0
      %1552 = vmatprep.subr.mxu0 0.0
      %1553 = vmatpush2.msra.mxu0 0.0
      %1554 = vmatprep.subr.mxu0 0.0
      %1555 = vmatpush2.msra.mxu0 0.0
      %1556 = vmatprep.subr.mxu0 0.0
      %1557 = vmatpush2.msra.mxu0 0.0
      %1558 = vmatprep.subr.mxu0 0.0
      %1559 = vmatpush2.msra.mxu0 0.0
      %1560 = vmatprep.subr.mxu0 0.0
      %1561 = vmatpush2.msra.mxu0 0.0
      %1562 = vmatprep.subr.mxu0 0.0
      %1563 = vmatpush2.msra.mxu0 0.0
      %1564 = vmatprep.subr.mxu0 0.0
      %1565 = vmatpush2.msra.mxu0 0.0
      %1566 = vmatprep.subr.mxu0 0.0
      %1567 = vmatpush2.msra.mxu0 0.0
      %1568 = vmatprep.mubr.f32.mxu0 0.0
      %1569 = vmatmul.mubr.f32.gmra.mxu0 %v1493
      %v1570 = vpop.f32.mrf.mxu0
      %v1571 = vadd.f32 %v1475, %v1570
      %v1572 = vpop.f32.mrf.mxu0
      %v1573 = vadd.f32 %v1475, %v1572
      %1574 = vmatprep.mubr.f32.mxu0 0.0
      %1575 = vmatmul.mubr.f32.gmra.mxu0 %v1496
      %v1576 = vpop.f32.mrf.mxu0
      %v1577 = vadd.f32 %v1480, %v1576
      %v1578 = vpop.f32.mrf.mxu0
      %v1579 = vadd.f32 %v1480, %v1578
      %1580 = vmatprep.mubr.f32.mxu0 0.0
      %1581 = vmatmul.mubr.f32.gmra.mxu0 %v1499
      %v1582 = vpop.f32.mrf.mxu0
      %v1583 = vadd.f32 %v1485, %v1582
      %v1584 = vpop.f32.mrf.mxu0
      %v1585 = vadd.f32 %v1485, %v1584
      %1586 = vmatprep.mubr.f32.mxu0 0.0
      %1587 = vmatmul.mubr.f32.gmra.mxu0 %v1502
      %v1588 = vpop.f32.mrf.mxu0
      %v1589 = vadd.f32 %v1490, %v1588
      %v1590 = vpop.f32.mrf.mxu0
      %v1591 = vadd.f32 %v1490, %v1590
      %1592 = vdwg.mxu0
      %vm1593 = vcmp.ge.f32.partialorder %v1571, 0.0
      %vm1594 = vcmp.ge.f32.partialorder %v1573, 0.0
      %vm1595 = vcmp.ge.f32.partialorder %v1577, 0.0
      %vm1596 = vcmp.ge.f32.partialorder %v1579, 0.0
      %vm1597 = vcmp.ge.f32.partialorder %v1583, 0.0
      %vm1598 = vcmp.ge.f32.partialorder %v1585, 0.0
      %vm1599 = vcmp.ge.f32.partialorder %v1589, 0.0
      %vm1600 = vcmp.ge.f32.partialorder %v1591, 0.0
      %v1601 = vmul.f32 %v1571, 0.01
      %v1602 = vmul.f32 %v1573, 0.01
      %v1603 = vmul.f32 %v1577, 0.01
      %v1604 = vmul.f32 %v1579, 0.01
      %v1605 = vmul.f32 %v1583, 0.01
      %v1606 = vmul.f32 %v1585, 0.01
      %v1607 = vmul.f32 %v1589, 0.01
      %v1608 = vmul.f32 %v1591, 0.01
      %v1609 = vsel %vm1593, %v1571, %v1601
      %v1610 = vsel %vm1594, %v1573, %v1602
      %v1611 = vsel %vm1595, %v1577, %v1603
      %v1612 = vsel %vm1596, %v1579, %v1604
      %v1613 = vsel %vm1597, %v1583, %v1605
      %v1614 = vsel %vm1598, %v1585, %v1606
      %v1615 = vsel %vm1599, %v1589, %v1607
      %v1616 = vsel %vm1600, %v1591, %v1608
      %v1617 = vsel %vm778, %v1609, 0.0
      %v1618 = vsel %vm779, %v1610, 0.0
      %v1619 = vsel %vm778, %v1611, 0.0
      %v1620 = vsel %vm779, %v1612, 0.0
      %v1621 = vsel %vm778, %v1613, 0.0
      %v1622 = vsel %vm779, %v1614, 0.0
      %v1623 = vsel %vm778, %v1615, 0.0
      %v1624 = vsel %vm779, %v1616, 0.0
      %v1625 = vld [vmem:[%s11] sm:$0xff]
      %v1626 = vld [vmem:[%s11 + $0x8] sm:$0xff]
      %v1627 = vld [vmem:[%s11 + $0x10] sm:$0xff]
      %v1628 = vld [vmem:[%s11 + $0x18] sm:$0xff]
      %v1629 = vld [vmem:[%s12] sm:$0xff]
      %v1630 = vld [vmem:[%s12 + $0x8] sm:$0xff]
      %v1631 = vld [vmem:[%s12 + $0x10] sm:$0xff]
      %v1632 = vld [vmem:[%s12 + $0x18] sm:$0xff]
      %1633 = vrot.lane.b32.xlu0 %v1617, 1
      %v1634 = vpop.permute.xlu0 %1633
      %1635 = vrot.lane.b32.xlu0 %v1619, 1
      %v1636 = vpop.permute.xlu0 %1635
      %1637 = vrot.lane.b32.xlu0 %v1621, 1
      %v1638 = vpop.permute.xlu0 %1637
      %1639 = vrot.lane.b32.xlu0 %v1623, 1
      %v1640 = vpop.permute.xlu0 %1639
      %1641 = vrot.lane.b32.xlu0 %v1618, 1
      %v1642 = vpop.permute.xlu0 %1641
      %1643 = vrot.lane.b32.xlu0 %v1620, 1
      %v1644 = vpop.permute.xlu0 %1643
      %1645 = vrot.lane.b32.xlu0 %v1622, 1
      %v1646 = vpop.permute.xlu0 %1645
      %1647 = vrot.lane.b32.xlu0 %v1624, 1
      %v1648 = vpop.permute.xlu0 %1647
      %v1649 = vsel %vm606, %v1634, %v1642
      %v1650 = vsel %vm606, %v1636, %v1644
      %v1651 = vsel %vm606, %v1638, %v1646
      %v1652 = vsel %vm606, %v1640, %v1648
      %v1653 = vsel %vm606, %v1642, %v1634
      %v1654 = vsel %vm606, %v1644, %v1636
      %v1655 = vsel %vm606, %v1646, %v1638
      %v1656 = vsel %vm606, %v1648, %v1640
      %1657 = vrot.lane.b32.xlu0 %v1617, 127
      %v1658 = vpop.permute.xlu0 %1657
      %1659 = vrot.lane.b32.xlu0 %v1619, 127
      %v1660 = vpop.permute.xlu0 %1659
      %1661 = vrot.lane.b32.xlu0 %v1621, 127
      %v1662 = vpop.permute.xlu0 %1661
      %1663 = vrot.lane.b32.xlu0 %v1623, 127
      %v1664 = vpop.permute.xlu0 %1663
      %1665 = vrot.lane.b32.xlu0 %v1618, 127
      %v1666 = vpop.permute.xlu0 %1665
      %1667 = vrot.lane.b32.xlu0 %v1620, 127
      %v1668 = vpop.permute.xlu0 %1667
      %1669 = vrot.lane.b32.xlu0 %v1622, 127
      %v1670 = vpop.permute.xlu0 %1669
      %1671 = vrot.lane.b32.xlu0 %v1624, 127
      %v1672 = vpop.permute.xlu0 %1671
      %v1673 = vsel %vm613, %v1658, %v1666
      %v1674 = vsel %vm613, %v1660, %v1668
      %v1675 = vsel %vm613, %v1662, %v1670
      %v1676 = vsel %vm613, %v1664, %v1672
      %v1677 = vsel %vm613, %v1666, %v1658
      %v1678 = vsel %vm613, %v1668, %v1660
      %v1679 = vsel %vm613, %v1670, %v1662
      %v1680 = vsel %vm613, %v1672, %v1664
      %1682 = vset.pattern.permute.xlu0 0
      %1683 = vperm.xlu0 %1682, %v1629
      %v1684 = vpop.permute.xlu0 %1683
      %1687 = vset.pattern.permute.xlu0 0
      %1688 = vperm.xlu0 %1687, %v1630
      %v1689 = vpop.permute.xlu0 %1688
      %1692 = vset.pattern.permute.xlu0 0
      %1693 = vperm.xlu0 %1692, %v1631
      %v1694 = vpop.permute.xlu0 %1693
      %1697 = vset.pattern.permute.xlu0 0
      %1698 = vperm.xlu0 %1697, %v1632
      %v1699 = vpop.permute.xlu0 %1698
      %v1702 = vsel %vm864, %v1625, 0
      %v1705 = vsel %vm864, %v1626, 0
      %v1708 = vsel %vm864, %v1627, 0
      %v1711 = vsel %vm864, %v1628, 0
      %1713 = vmatprep.subr.mxu0 0.0
      %1714 = vmatpush1.msra.mxu0 0.0
      %1715 = vmatprep.subr.mxu0 0.0
      %1716 = vmatpush1.msra.mxu0 0.0
      %1717 = vmatprep.subr.mxu0 0.0
      %1718 = vmatpush1.msra.mxu0 0.0
      %1719 = vmatprep.subr.mxu0 0.0
      %1720 = vmatpush1.msra.mxu0 0.0
      %1721 = vmatprep.subr.mxu0 %v1680
      %1722 = vmatpush1.msra.mxu0 %v1676
      %1723 = vmatprep.subr.mxu0 %v1679
      %1724 = vmatpush1.msra.mxu0 %v1675
      %1725 = vmatprep.subr.mxu0 %v1678
      %1726 = vmatpush1.msra.mxu0 %v1674
      %1727 = vmatprep.subr.mxu0 %v1677
      %1728 = vmatpush1.msra.mxu0 %v1673
      %1729 = vmatprep.subr.mxu0 %v1624
      %1730 = vmatpush1.msra.mxu0 %v1623
      %1731 = vmatprep.subr.mxu0 %v1622
      %1732 = vmatpush1.msra.mxu0 %v1621
      %1733 = vmatprep.subr.mxu0 %v1620
      %1734 = vmatpush1.msra.mxu0 %v1619
      %1735 = vmatprep.subr.mxu0 %v1618
      %1736 = vmatpush1.msra.mxu0 %v1617
      %1737 = vmatprep.subr.mxu0 %v1652
      %1738 = vmatpush1.msra.mxu0 %v1656
      %1739 = vmatprep.subr.mxu0 %v1651
      %1740 = vmatpush1.msra.mxu0 %v1655
      %1741 = vmatprep.subr.mxu0 %v1650
      %1742 = vmatpush1.msra.mxu0 %v1654
      %1743 = vmatprep.subr.mxu0 %v1649
      %1744 = vmatpush1.msra.mxu0 %v1653
      %1745 = vmatprep.subr.mxu0 0.0
      %1746 = vmatpush2.msra.mxu0 0.0
      %1747 = vmatprep.subr.mxu0 0.0
      %1748 = vmatpush2.msra.mxu0 0.0
      %1749 = vmatprep.subr.mxu0 0.0
      %1750 = vmatpush2.msra.mxu0 0.0
      %1751 = vmatprep.subr.mxu0 0.0
      %1752 = vmatpush2.msra.mxu0 0.0
      %1753 = vmatprep.subr.mxu0 0.0
      %1754 = vmatpush2.msra.mxu0 0.0
      %1755 = vmatprep.subr.mxu0 0.0
      %1756 = vmatpush2.msra.mxu0 0.0
      %1757 = vmatprep.subr.mxu0 0.0
      %1758 = vmatpush2.msra.mxu0 0.0
      %1759 = vmatprep.subr.mxu0 0.0
      %1760 = vmatpush2.msra.mxu0 0.0
      %1761 = vmatprep.subr.mxu0 0.0
      %1762 = vmatpush2.msra.mxu0 0.0
      %1763 = vmatprep.subr.mxu0 0.0
      %1764 = vmatpush2.msra.mxu0 0.0
      %1765 = vmatprep.subr.mxu0 0.0
      %1766 = vmatpush2.msra.mxu0 0.0
      %1767 = vmatprep.subr.mxu0 0.0
      %1768 = vmatpush2.msra.mxu0 0.0
      %1769 = vmatprep.subr.mxu0 0.0
      %1770 = vmatpush2.msra.mxu0 0.0
      %1771 = vmatprep.subr.mxu0 0.0
      %1772 = vmatpush2.msra.mxu0 0.0
      %1773 = vmatprep.subr.mxu0 0.0
      %1774 = vmatpush2.msra.mxu0 0.0
      %1775 = vmatprep.subr.mxu0 0.0
      %1776 = vmatpush2.msra.mxu0 0.0
      %1777 = vmatprep.mubr.f32.mxu0 0.0
      %1778 = vmatmul.mubr.f32.gmra.mxu0 %v1702
      %v1779 = vpop.f32.mrf.mxu0
      %v1780 = vadd.f32 %v1684, %v1779
      %v1781 = vpop.f32.mrf.mxu0
      %v1782 = vadd.f32 %v1684, %v1781
      %1783 = vmatprep.mubr.f32.mxu0 0.0
      %1784 = vmatmul.mubr.f32.gmra.mxu0 %v1705
      %v1785 = vpop.f32.mrf.mxu0
      %v1786 = vadd.f32 %v1689, %v1785
      %v1787 = vpop.f32.mrf.mxu0
      %v1788 = vadd.f32 %v1689, %v1787
      %1789 = vmatprep.mubr.f32.mxu0 0.0
      %1790 = vmatmul.mubr.f32.gmra.mxu0 %v1708
      %v1791 = vpop.f32.mrf.mxu0
      %v1792 = vadd.f32 %v1694, %v1791
      %v1793 = vpop.f32.mrf.mxu0
      %v1794 = vadd.f32 %v1694, %v1793
      %1795 = vmatprep.mubr.f32.mxu0 0.0
      %1796 = vmatmul.mubr.f32.gmra.mxu0 %v1711
      %v1797 = vpop.f32.mrf.mxu0
      %v1798 = vadd.f32 %v1699, %v1797
      %v1799 = vpop.f32.mrf.mxu0
      %v1800 = vadd.f32 %v1699, %v1799
      %1801 = vdwg.mxu0
      %vm1802 = vcmp.ge.f32.partialorder %v1780, 0.0
      %vm1803 = vcmp.ge.f32.partialorder %v1782, 0.0
      %vm1804 = vcmp.ge.f32.partialorder %v1786, 0.0
      %vm1805 = vcmp.ge.f32.partialorder %v1788, 0.0
      %vm1806 = vcmp.ge.f32.partialorder %v1792, 0.0
      %vm1807 = vcmp.ge.f32.partialorder %v1794, 0.0
      %vm1808 = vcmp.ge.f32.partialorder %v1798, 0.0
      %vm1809 = vcmp.ge.f32.partialorder %v1800, 0.0
      %v1810 = vmul.f32 %v1780, 0.01
      %v1811 = vmul.f32 %v1782, 0.01
      %v1812 = vmul.f32 %v1786, 0.01
      %v1813 = vmul.f32 %v1788, 0.01
      %v1814 = vmul.f32 %v1792, 0.01
      %v1815 = vmul.f32 %v1794, 0.01
      %v1816 = vmul.f32 %v1798, 0.01
      %v1817 = vmul.f32 %v1800, 0.01
      %v1818 = vsel %vm1802, %v1780, %v1810
      %v1819 = vsel %vm1803, %v1782, %v1811
      %v1820 = vsel %vm1804, %v1786, %v1812
      %v1821 = vsel %vm1805, %v1788, %v1813
      %v1822 = vsel %vm1806, %v1792, %v1814
      %v1823 = vsel %vm1807, %v1794, %v1815
      %v1824 = vsel %vm1808, %v1798, %v1816
      %v1825 = vsel %vm1809, %v1800, %v1817
      %v1826 = vsel %vm778, %v1818, 0.0
      %v1827 = vsel %vm779, %v1819, 0.0
      %v1828 = vsel %vm778, %v1820, 0.0
      %v1829 = vsel %vm779, %v1821, 0.0
      %v1830 = vsel %vm778, %v1822, 0.0
      %v1831 = vsel %vm779, %v1823, 0.0
      %v1832 = vsel %vm778, %v1824, 0.0
      %v1833 = vsel %vm779, %v1825, 0.0
      %v1834 = vld [vmem:[%s13] sm:$0xff]
      %v1835 = vld [vmem:[%s13 + $0x8] sm:$0xff]
      %v1836 = vld [vmem:[%s13 + $0x10] sm:$0xff]
      %v1837 = vld [vmem:[%s13 + $0x18] sm:$0xff]
      %v1838 = vld [vmem:[%s14] sm:$0xff]
      %v1839 = vld [vmem:[%s14 + $0x8] sm:$0xff]
      %v1840 = vld [vmem:[%s14 + $0x10] sm:$0xff]
      %v1841 = vld [vmem:[%s14 + $0x18] sm:$0xff]
      %1842 = vrot.lane.b32.xlu0 %v1826, 1
      %v1843 = vpop.permute.xlu0 %1842
      %1844 = vrot.lane.b32.xlu0 %v1828, 1
      %v1845 = vpop.permute.xlu0 %1844
      %1846 = vrot.lane.b32.xlu0 %v1830, 1
      %v1847 = vpop.permute.xlu0 %1846
      %1848 = vrot.lane.b32.xlu0 %v1832, 1
      %v1849 = vpop.permute.xlu0 %1848
      %1850 = vrot.lane.b32.xlu0 %v1827, 1
      %v1851 = vpop.permute.xlu0 %1850
      %1852 = vrot.lane.b32.xlu0 %v1829, 1
      %v1853 = vpop.permute.xlu0 %1852
      %1854 = vrot.lane.b32.xlu0 %v1831, 1
      %v1855 = vpop.permute.xlu0 %1854
      %1856 = vrot.lane.b32.xlu0 %v1833, 1
      %v1857 = vpop.permute.xlu0 %1856
      %v1858 = vsel %vm606, %v1843, %v1851
      %v1859 = vsel %vm606, %v1845, %v1853
      %v1860 = vsel %vm606, %v1847, %v1855
      %v1861 = vsel %vm606, %v1849, %v1857
      %v1862 = vsel %vm606, %v1851, %v1843
      %v1863 = vsel %vm606, %v1853, %v1845
      %v1864 = vsel %vm606, %v1855, %v1847
      %v1865 = vsel %vm606, %v1857, %v1849
      %1866 = vrot.lane.b32.xlu0 %v1826, 127
      %v1867 = vpop.permute.xlu0 %1866
      %1868 = vrot.lane.b32.xlu0 %v1828, 127
      %v1869 = vpop.permute.xlu0 %1868
      %1870 = vrot.lane.b32.xlu0 %v1830, 127
      %v1871 = vpop.permute.xlu0 %1870
      %1872 = vrot.lane.b32.xlu0 %v1832, 127
      %v1873 = vpop.permute.xlu0 %1872
      %1874 = vrot.lane.b32.xlu0 %v1827, 127
      %v1875 = vpop.permute.xlu0 %1874
      %1876 = vrot.lane.b32.xlu0 %v1829, 127
      %v1877 = vpop.permute.xlu0 %1876
      %1878 = vrot.lane.b32.xlu0 %v1831, 127
      %v1879 = vpop.permute.xlu0 %1878
      %1880 = vrot.lane.b32.xlu0 %v1833, 127
      %v1881 = vpop.permute.xlu0 %1880
      %v1882 = vsel %vm613, %v1867, %v1875
      %v1883 = vsel %vm613, %v1869, %v1877
      %v1884 = vsel %vm613, %v1871, %v1879
      %v1885 = vsel %vm613, %v1873, %v1881
      %v1886 = vsel %vm613, %v1875, %v1867
      %v1887 = vsel %vm613, %v1877, %v1869
      %v1888 = vsel %vm613, %v1879, %v1871
      %v1889 = vsel %vm613, %v1881, %v1873
      %1891 = vset.pattern.permute.xlu0 0
      %1892 = vperm.xlu0 %1891, %v1838
      %v1893 = vpop.permute.xlu0 %1892
      %1896 = vset.pattern.permute.xlu0 0
      %1897 = vperm.xlu0 %1896, %v1839
      %v1898 = vpop.permute.xlu0 %1897
      %1901 = vset.pattern.permute.xlu0 0
      %1902 = vperm.xlu0 %1901, %v1840
      %v1903 = vpop.permute.xlu0 %1902
      %1906 = vset.pattern.permute.xlu0 0
      %1907 = vperm.xlu0 %1906, %v1841
      %v1908 = vpop.permute.xlu0 %1907
      %v1911 = vsel %vm864, %v1834, 0
      %v1914 = vsel %vm864, %v1835, 0
      %v1917 = vsel %vm864, %v1836, 0
      %v1920 = vsel %vm864, %v1837, 0
      %1922 = vmatprep.subr.mxu0 0.0
      %1923 = vmatpush1.msra.mxu0 0.0
      %1924 = vmatprep.subr.mxu0 0.0
      %1925 = vmatpush1.msra.mxu0 0.0
      %1926 = vmatprep.subr.mxu0 0.0
      %1927 = vmatpush1.msra.mxu0 0.0
      %1928 = vmatprep.subr.mxu0 0.0
      %1929 = vmatpush1.msra.mxu0 0.0
      %1930 = vmatprep.subr.mxu0 %v1889
      %1931 = vmatpush1.msra.mxu0 %v1885
      %1932 = vmatprep.subr.mxu0 %v1888
      %1933 = vmatpush1.msra.mxu0 %v1884
      %1934 = vmatprep.subr.mxu0 %v1887
      %1935 = vmatpush1.msra.mxu0 %v1883
      %1936 = vmatprep.subr.mxu0 %v1886
      %1937 = vmatpush1.msra.mxu0 %v1882
      %1938 = vmatprep.subr.mxu0 %v1833
      %1939 = vmatpush1.msra.mxu0 %v1832
      %1940 = vmatprep.subr.mxu0 %v1831
      %1941 = vmatpush1.msra.mxu0 %v1830
      %1942 = vmatprep.subr.mxu0 %v1829
      %1943 = vmatpush1.msra.mxu0 %v1828
      %1944 = vmatprep.subr.mxu0 %v1827
      %1945 = vmatpush1.msra.mxu0 %v1826
      %1946 = vmatprep.subr.mxu0 %v1861
      %1947 = vmatpush1.msra.mxu0 %v1865
      %1948 = vmatprep.subr.mxu0 %v1860
      %1949 = vmatpush1.msra.mxu0 %v1864
      %1950 = vmatprep.subr.mxu0 %v1859
      %1951 = vmatpush1.msra.mxu0 %v1863
      %1952 = vmatprep.subr.mxu0 %v1858
      %1953 = vmatpush1.msra.mxu0 %v1862
      %1954 = vmatprep.subr.mxu0 0.0
      %1955 = vmatpush2.msra.mxu0 0.0
      %1956 = vmatprep.subr.mxu0 0.0
      %1957 = vmatpush2.msra.mxu0 0.0
      %1958 = vmatprep.subr.mxu0 0.0
      %1959 = vmatpush2.msra.mxu0 0.0
      %1960 = vmatprep.subr.mxu0 0.0
      %1961 = vmatpush2.msra.mxu0 0.0
      %1962 = vmatprep.subr.mxu0 0.0
      %1963 = vmatpush2.msra.mxu0 0.0
      %1964 = vmatprep.subr.mxu0 0.0
      %1965 = vmatpush2.msra.mxu0 0.0
      %1966 = vmatprep.subr.mxu0 0.0
      %1967 = vmatpush2.msra.mxu0 0.0
      %1968 = vmatprep.subr.mxu0 0.0
      %1969 = vmatpush2.msra.mxu0 0.0
      %1970 = vmatprep.subr.mxu0 0.0
      %1971 = vmatpush2.msra.mxu0 0.0
      %1972 = vmatprep.subr.mxu0 0.0
      %1973 = vmatpush2.msra.mxu0 0.0
      %1974 = vmatprep.subr.mxu0 0.0
      %1975 = vmatpush2.msra.mxu0 0.0
      %1976 = vmatprep.subr.mxu0 0.0
      %1977 = vmatpush2.msra.mxu0 0.0
      %1978 = vmatprep.subr.mxu0 0.0
      %1979 = vmatpush2.msra.mxu0 0.0
      %1980 = vmatprep.subr.mxu0 0.0
      %1981 = vmatpush2.msra.mxu0 0.0
      %1982 = vmatprep.subr.mxu0 0.0
      %1983 = vmatpush2.msra.mxu0 0.0
      %1984 = vmatprep.subr.mxu0 0.0
      %1985 = vmatpush2.msra.mxu0 0.0
      %1986 = vmatprep.mubr.f32.mxu0 0.0
      %1987 = vmatmul.mubr.f32.gmra.mxu0 %v1911
      %v1988 = vpop.f32.mrf.mxu0
      %v1989 = vadd.f32 %v1893, %v1988
      %v1990 = vpop.f32.mrf.mxu0
      %v1991 = vadd.f32 %v1893, %v1990
      %1992 = vmatprep.mubr.f32.mxu0 0.0
      %1993 = vmatmul.mubr.f32.gmra.mxu0 %v1914
      %v1994 = vpop.f32.mrf.mxu0
      %v1995 = vadd.f32 %v1898, %v1994
      %v1996 = vpop.f32.mrf.mxu0
      %v1997 = vadd.f32 %v1898, %v1996
      %1998 = vmatprep.mubr.f32.mxu0 0.0
      %1999 = vmatmul.mubr.f32.gmra.mxu0 %v1917
      %v2000 = vpop.f32.mrf.mxu0
      %v2001 = vadd.f32 %v1903, %v2000
      %v2002 = vpop.f32.mrf.mxu0
      %v2003 = vadd.f32 %v1903, %v2002
      %2004 = vmatprep.mubr.f32.mxu0 0.0
      %2005 = vmatmul.mubr.f32.gmra.mxu0 %v1920
      %v2006 = vpop.f32.mrf.mxu0
      %v2007 = vadd.f32 %v1908, %v2006
      %v2008 = vpop.f32.mrf.mxu0
      %v2009 = vadd.f32 %v1908, %v2008
      %2010 = vdwg.mxu0
      %vm2011 = vcmp.ge.f32.partialorder %v1989, 0.0
      %vm2012 = vcmp.ge.f32.partialorder %v1991, 0.0
      %vm2013 = vcmp.ge.f32.partialorder %v1995, 0.0
      %vm2014 = vcmp.ge.f32.partialorder %v1997, 0.0
      %vm2015 = vcmp.ge.f32.partialorder %v2001, 0.0
      %vm2016 = vcmp.ge.f32.partialorder %v2003, 0.0
      %vm2017 = vcmp.ge.f32.partialorder %v2007, 0.0
      %vm2018 = vcmp.ge.f32.partialorder %v2009, 0.0
      %v2019 = vmul.f32 %v1989, 0.01
      %v2020 = vmul.f32 %v1991, 0.01
      %v2021 = vmul.f32 %v1995, 0.01
      %v2022 = vmul.f32 %v1997, 0.01
      %v2023 = vmul.f32 %v2001, 0.01
      %v2024 = vmul.f32 %v2003, 0.01
      %v2025 = vmul.f32 %v2007, 0.01
      %v2026 = vmul.f32 %v2009, 0.01
      %v2027 = vsel %vm2011, %v1989, %v2019
      %v2028 = vsel %vm2012, %v1991, %v2020
      %v2029 = vsel %vm2013, %v1995, %v2021
      %v2030 = vsel %vm2014, %v1997, %v2022
      %v2031 = vsel %vm2015, %v2001, %v2023
      %v2032 = vsel %vm2016, %v2003, %v2024
      %v2033 = vsel %vm2017, %v2007, %v2025
      %v2034 = vsel %vm2018, %v2009, %v2026
      %v2035 = vsel %vm778, %v2027, 0.0
      %v2036 = vsel %vm779, %v2028, 0.0
      %v2037 = vsel %vm778, %v2029, 0.0
      %v2038 = vsel %vm779, %v2030, 0.0
      %v2039 = vsel %vm778, %v2031, 0.0
      %v2040 = vsel %vm779, %v2032, 0.0
      %v2041 = vsel %vm778, %v2033, 0.0
      %v2042 = vsel %vm779, %v2034, 0.0
      %vm2043 = vcmp.ge.s32.totalorder %v571, 7
      %vm2044 = vcmp.ge.s32.totalorder %v572, 7
      %vm2045 = vcmp.lt.s32.totalorder %v571, 135
      %vm2046 = vcmp.lt.s32.totalorder %v572, 135
      %vm2047 = vmand %vm2043, %vm2045
      %vm2048 = vmand %vm2044, %vm2046
      %v2049 = vld [vmem:[#allocation2] sm:$0xff]
      %v2050 = vld [vmem:[#allocation2 + $0x8] sm:$0xff]
      %v2051 = vld [vmem:[#allocation2 + $0x10] sm:$0xff]
      %v2052 = vld [vmem:[#allocation2 + $0x18] sm:$0xff]
      %v2053 = vsel %vm2047, 1, 0
      %v2054 = vsel %vm2048, 1, 0
      %vm2055 = vcmp.eq.s32.totalorder %v2053, 1
      %vm2056 = vcmp.eq.s32.totalorder %v2054, 1
      %v2057 = vsel %vm2055, %v2035, 0.0
      %v2058 = vsel %vm2056, %v2036, 0.0
      %v2059 = vsel %vm2055, %v2037, 0.0
      %v2060 = vsel %vm2056, %v2038, 0.0
      %v2061 = vsel %vm2055, %v2039, 0.0
      %v2062 = vsel %vm2056, %v2040, 0.0
      %v2063 = vsel %vm2055, %v2041, 0.0
      %v2064 = vsel %vm2056, %v2042, 0.0
      %v2065 = vadd.f32 %v2057, %v2058
      %2066 = vadd.xlane.f32.xlu0 %v2065
      %v2067 = vpop.xlane.xlu0 %2066
      %v2068 = vadd.f32 %v2059, %v2060
      %2069 = vadd.xlane.f32.xlu0 %v2068
      %v2070 = vpop.xlane.xlu0 %2069
      %v2071 = vadd.f32 %v2061, %v2062
      %2072 = vadd.xlane.f32.xlu0 %v2071
      %v2073 = vpop.xlane.xlu0 %2072
      %v2074 = vadd.f32 %v2063, %v2064
      %2075 = vadd.xlane.f32.xlu0 %v2074
      %v2076 = vpop.xlane.xlu0 %2075
      %v2077 = vadd.f32 %v2049, %v2067
      %v2078 = vadd.f32 %v2050, %v2070
      %v2079 = vadd.f32 %v2051, %v2073
      %v2080 = vadd.f32 %v2052, %v2076
      %vm2081 = vcmask 7168
      %2082 = vst.msk [vmem:[#allocation2] sm:$0xff] %vm2081, %v2077
      %2083 = vst.msk [vmem:[#allocation2 + $0x8] sm:$0xff] %vm2081, %v2078
      %2084 = vst.msk [vmem:[#allocation2 + $0x10] sm:$0xff] %vm2081, %v2079
      %2085 = vst.msk [vmem:[#allocation2 + $0x18] sm:$0xff] %vm2081, %v2080
      // Predicated region
      $region93: #{decoder_wav_forward.1} parent=87 // pred_check
        %p2086 = pneg %p557
      $region94: #{decoder_wav_forward.1} parent=87 // pred_check_branch
        %2088 = sbr.rel (%p2086) target = $region96
      $region95: #{decoder_wav_forward.1} parent=87 // pred_region
        %2093 = vrot.lane.b32.xlu0 %v2035, 121
        %v2094 = vpop.permute.xlu0 %2093
        %2095 = vrot.lane.b32.xlu0 %v2037, 121
        %v2096 = vpop.permute.xlu0 %2095
        %2097 = vrot.lane.b32.xlu0 %v2039, 121
        %v2098 = vpop.permute.xlu0 %2097
        %2099 = vrot.lane.b32.xlu0 %v2041, 121
        %v2100 = vpop.permute.xlu0 %2099
        %2105 = vst.msk [vmem:[#allocation3] sm:$0xff] %vm2081, %v2094
        %2106 = vst.msk [vmem:[#allocation3 + $0x8] sm:$0xff] %vm2081, %v2096
        %2107 = vst.msk [vmem:[#allocation3 + $0x10] sm:$0xff] %vm2081, %v2098
        %2108 = vst.msk [vmem:[#allocation3 + $0x18] sm:$0xff] %vm2081, %v2100
      $region96: #{decoder_wav_forward.1} parent=87 // pred_fallthru
        _
      %p2109 = scmp.eq.s32.totalorder %s33, 2
      // Predicated region
      $region97: #{decoder_wav_forward.1} parent=87 // pred_check
        %p2110 = pneg %p2109
      $region98: #{decoder_wav_forward.1} parent=87 // pred_check_branch
        %2112 = sbr.rel (%p2110) target = $region100
      $region99: #{decoder_wav_forward.1} parent=87 // pred_region
        %v2113 = vld [vmem:[%s15] sm:$0xff]
        %v2114 = vld [vmem:[%s16] sm:$0xff]
        %v2115 = vld [vmem:[#allocation2] sm:$0xff]
        %v2116 = vld [vmem:[#allocation2 + $0x8] sm:$0xff]
        %v2117 = vld [vmem:[#allocation2 + $0x10] sm:$0xff]
        %v2118 = vld [vmem:[#allocation2 + $0x18] sm:$0xff]
        %v2119 = vld [vmem:[#allocation3] sm:$0xff]
        %v2120 = vld [vmem:[#allocation3 + $0x8] sm:$0xff]
        %v2121 = vld [vmem:[#allocation3 + $0x10] sm:$0xff]
        %v2122 = vld [vmem:[#allocation3 + $0x18] sm:$0xff]
        %2127 = vrot.lane.b32.xlu0 %v2035, 78
        %v2128 = vpop.permute.xlu0 %2127
        %2129 = vrot.lane.b32.xlu0 %v2037, 78
        %v2130 = vpop.permute.xlu0 %2129
        %2131 = vrot.lane.b32.xlu0 %v2039, 78
        %v2132 = vpop.permute.xlu0 %2131
        %2133 = vrot.lane.b32.xlu0 %v2041, 78
        %v2134 = vpop.permute.xlu0 %2133
        %v2139 = vsub.f32 %v2115, %v2128
        %v2140 = vsub.f32 %v2116, %v2130
        %v2141 = vsub.f32 %v2117, %v2132
        %v2142 = vsub.f32 %v2118, %v2134
        %v2143 = vsub.f32 %v2115, %v2119
        %v2144 = vsub.f32 %v2116, %v2120
        %v2145 = vsub.f32 %v2117, %v2121
        %v2146 = vsub.f32 %v2118, %v2122
        %v2147 = vmul.f32 %v2139, 0.0033333334
        %v2148 = vmul.f32 %v2140, 0.0033333334
        %v2149 = vmul.f32 %v2141, 0.0033333334
        %v2150 = vmul.f32 %v2142, 0.0033333334
        %v2151 = vmul.f32 %v2115, 0.0033333334
        %v2152 = vmul.f32 %v2116, 0.0033333334
        %v2153 = vmul.f32 %v2117, 0.0033333334
        %v2154 = vmul.f32 %v2118, 0.0033333334
        %v2155 = vmul.f32 %v2143, 0.0033333334
        %v2156 = vmul.f32 %v2144, 0.0033333334
        %v2157 = vmul.f32 %v2145, 0.0033333334
        %v2158 = vmul.f32 %v2146, 0.0033333334
        %v2160 = vsel %vm864, %v2113, 0
        %2162 = vmatprep.subr.mxu0 0.0
        %2163 = vmatpush1.msra.mxu0 0.0
        %2164 = vmatprep.subr.mxu0 0.0
        %2165 = vmatpush1.msra.mxu0 0.0
        %2166 = vmatprep.subr.mxu0 0.0
        %2167 = vmatpush1.msra.mxu0 0.0
        %2168 = vmatprep.subr.mxu0 0.0
        %2169 = vmatpush1.msra.mxu0 0.0
        %2170 = vmatprep.subr.mxu0 0.0
        %2171 = vmatpush1.msra.mxu0 %v2158
        %2172 = vmatprep.subr.mxu0 0.0
        %2173 = vmatpush1.msra.mxu0 %v2157
        %2174 = vmatprep.subr.mxu0 0.0
        %2175 = vmatpush1.msra.mxu0 %v2156
        %2176 = vmatprep.subr.mxu0 0.0
        %2177 = vmatpush1.msra.mxu0 %v2155
        %2178 = vmatprep.subr.mxu0 0.0
        %2179 = vmatpush1.msra.mxu0 %v2154
        %2180 = vmatprep.subr.mxu0 0.0
        %2181 = vmatpush1.msra.mxu0 %v2153
        %2182 = vmatprep.subr.mxu0 0.0
        %2183 = vmatpush1.msra.mxu0 %v2152
        %2184 = vmatprep.subr.mxu0 0.0
        %2185 = vmatpush1.msra.mxu0 %v2151
        %2186 = vmatprep.subr.mxu0 0.0
        %2187 = vmatpush1.msra.mxu0 %v2150
        %2188 = vmatprep.subr.mxu0 0.0
        %2189 = vmatpush1.msra.mxu0 %v2149
        %2190 = vmatprep.subr.mxu0 0.0
        %2191 = vmatpush1.msra.mxu0 %v2148
        %2192 = vmatprep.subr.mxu0 0.0
        %2193 = vmatpush1.msra.mxu0 %v2147
        %2194 = vmatprep.subr.mxu0 0.0
        %2195 = vmatpush2.msra.mxu0 0.0
        %2196 = vmatprep.subr.mxu0 0.0
        %2197 = vmatpush2.msra.mxu0 0.0
        %2198 = vmatprep.subr.mxu0 0.0
        %2199 = vmatpush2.msra.mxu0 0.0
        %2200 = vmatprep.subr.mxu0 0.0
        %2201 = vmatpush2.msra.mxu0 0.0
        %2202 = vmatprep.subr.mxu0 0.0
        %2203 = vmatpush2.msra.mxu0 0.0
        %2204 = vmatprep.subr.mxu0 0.0
        %2205 = vmatpush2.msra.mxu0 0.0
        %2206 = vmatprep.subr.mxu0 0.0
        %2207 = vmatpush2.msra.mxu0 0.0
        %2208 = vmatprep.subr.mxu0 0.0
        %2209 = vmatpush2.msra.mxu0 0.0
        %2210 = vmatprep.subr.mxu0 0.0
        %2211 = vmatpush2.msra.mxu0 0.0
        %2212 = vmatprep.subr.mxu0 0.0
        %2213 = vmatpush2.msra.mxu0 0.0
        %2214 = vmatprep.subr.mxu0 0.0
        %2215 = vmatpush2.msra.mxu0 0.0
        %2216 = vmatprep.subr.mxu0 0.0
        %2217 = vmatpush2.msra.mxu0 0.0
        %2218 = vmatprep.subr.mxu0 0.0
        %2219 = vmatpush2.msra.mxu0 0.0
        %2220 = vmatprep.subr.mxu0 0.0
        %2221 = vmatpush2.msra.mxu0 0.0
        %2222 = vmatprep.subr.mxu0 0.0
        %2223 = vmatpush2.msra.mxu0 0.0
        %2224 = vmatprep.subr.mxu0 0.0
        %2225 = vmatpush2.msra.mxu0 0.0
        %2226 = vmatprep.mubr.f32.mxu0 0.0
        %2227 = vmatmul.mubr.f32.gmra.mxu0 %v2160
        %v2228 = vpop.f32.mrf.mxu0
        %v2229 = vadd.f32 %v2114, %v2228
        %v2230 = vpop.f32.mrf.mxu0
        %2231 = vdwg.mxu0
        %2232 = vst.msk [vmem:[%s555] sm:$0xff] %vm2081, %v2229
      $region100: #{decoder_wav_forward.1} parent=87 // pred_fallthru
        _
      %p2233 = scmp.lt.s32.totalorder %s32, 1
      %s2234 = scalar_select %p2233, %s32, 1
      %s2235 = smul.addr %s2234, 8
      %s2236 = scalar_lea.vmem %s17, %s2235
      // Predicated region
      $region101: #{decoder_wav_forward.1} parent=87 // pred_check
        %p2237 = pneg %p420
      $region102: #{decoder_wav_forward.1} parent=87 // pred_check_branch
        %2239 = sbr.rel (%p2237) target = $region104
      $region103: #{decoder_wav_forward.1} parent=87 // pred_region
        _
      $region104: #{decoder_wav_forward.1} parent=87 // pred_fallthru
        _
    $region88: #{decoder_wav_forward.1} parent=5 // pred_fallthru
      _
    %p2240 = scmp.le.s32.totalorder 2, %s23
    // Predicated region
    $region105: #{decoder_wav_forward.1} parent=5 // pred_check
      %p2241 = pneg %p2240
    $region106: #{decoder_wav_forward.1} parent=5 // pred_check_branch
      %2243 = sbr.rel (%p2241) target = $region108
    $region107: #{decoder_wav_forward.1} parent=5 // pred_region
      %s2244 = ssub.s32 %s23, 2
      // Predicated region
      $region109: #{decoder_wav_forward.1} parent=107 // pred_check
        %p2245 = pneg %p426
      $region110: #{decoder_wav_forward.1} parent=107 // pred_check_branch
        %2247 = sbr.rel (%p2245) target = $region112
      $region111: #{decoder_wav_forward.1} parent=107 // pred_region
        %p2248 = scmp.lt.s32.totalorder %s34, 1
        %s2249 = scalar_select %p2248, %s34, 1
        %s2250 = smul.addr %s2249, 8
        %s2251 = scalar_lea.vmem %s17, %s2250
      $region112: #{decoder_wav_forward.1} parent=107 // pred_fallthru
        _
    $region108: #{decoder_wav_forward.1} parent=5 // pred_fallthru
      _
  $region6: #{decoder_wav_forward.1} parent=0 // loop_footer
    %s27 = sadd.s32 1, %s23
  $region7: #{decoder_wav_forward.1} parent=0 // loop_footer_branch
    %22 = sbr.rel target = $region3
  $region8: #{decoder_wav_forward.1} parent=0 // loop_exit
    _

</llo_original>
